<compile_context>
chip_gen: v5e
topology: v5e:2x2
jax: 0.10.0
libtpu: 0.0.40
codegen_flags: <defaults>
</compile_context>

<pallas_src>
import functools

import jax
import jax.numpy as jnp
from jax.experimental import pallas as pl
from jax.experimental.pallas import tpu as pltpu


def _vmem_limit_bytes():
    """Per-generation VMEM budget: physical - 16 MiB headroom, capped at 112 MiB."""
    cap = 64 * 1024 * 1024
    get_info = getattr(pltpu, "get_tpu_info", None)
    if get_info is not None:
        try:
            cap = int(getattr(get_info(), "vmem_capacity_bytes", cap) or cap)
        except Exception:
            cap = 64 * 1024 * 1024
    return int(max(32 * 1024 * 1024, min(cap - 16 * 1024 * 1024, 112 * 1024 * 1024)))


_VMEM_LIMIT = _vmem_limit_bytes()


def _round_up(x, m):
    return (x + m - 1) // m * m


def _largest_tile(total, cap, quantum=128):
    """Largest multiple of `quantum` that divides `total` and is <= cap (falls back to total)."""
    if total % quantum:
        return total
    cap = max(quantum, min(total, cap))
    best = quantum
    t = quantum
    while t <= cap:
        if total % t == 0:
            best = t
        t += quantum
    return best


def _head_group_width(num_heads, head_dim):
    """Lane-aligned head-group width for the attention kernel."""
    if head_dim % 128 == 0:
        return head_dim
    if 128 % head_dim == 0 and num_heads % (128 // head_dim) == 0:
        return 128
    return num_heads * head_dim  # fallback: all heads in one (full-H) block


# ---------------------------------------------------------------------------
# Kernel 1: LayerNorm1 + fused QKV projection over row tiles of (B*S_pad, H).
# ---------------------------------------------------------------------------
def _ln_qkv_kernel(x_ref, ln1w_ref, ln1b_ref, wqkv_ref, bqkv_ref,
                   q_ref, k_ref, v_ref, *, eps, hidden):
    x = x_ref[...]                                           # (ts, H) f32
    mu = jnp.mean(x, axis=-1, keepdims=True)
    var = jnp.mean((x - mu) ** 2, axis=-1, keepdims=True)    # biased, like torch LN
    h = ((x - mu) * jax.lax.rsqrt(var + eps) * ln1w_ref[...] + ln1b_ref[...]
         ).astype(jnp.bfloat16)
    r = jnp.dot(h, wqkv_ref[...], preferred_element_type=jnp.float32) + bqkv_ref[...]
    q_ref[...] = r[:, :hidden].astype(jnp.bfloat16)          # scale folded into W_q / b_q
    k_ref[...] = r[:, hidden:2 * hidden].astype(jnp.bfloat16)
    v_ref[...] = r[:, 2 * hidden:].astype(jnp.bfloat16)


# ---------------------------------------------------------------------------
# Kernel 2: attention for one (batch, head-group) pair, (B,S,H) layout in/out.
# ---------------------------------------------------------------------------
def _attn_group_kernel(mask_ref, q_ref, k_ref, v_ref, o_ref, *, head_dim, heads_per_group):
    qg = q_ref[0]                                            # (S, Gw) bf16
    kg = k_ref[0]
    vg = v_ref[0]
    mask = mask_ref[...]                                     # (S, S) f32 additive mask
    outs = []
    for h in range(heads_per_group):
        lo = h * head_dim
        hi = lo + head_dim
        q = qg[:, lo:hi]
        k = kg[:, lo:hi]
        v = vg[:, lo:hi]
        s = jax.lax.dot_general(q, k, (((1,), (1,)), ((), ())),
                                preferred_element_type=jnp.float32)
        s = s + mask
        s = s - jnp.max(s, axis=-1, keepdims=True)           # stable softmax (f32 stats)
        p = jnp.exp(s)
        denom = jnp.sum(p, axis=-1, keepdims=True)
        o = jnp.dot(p.astype(jnp.bfloat16), v, preferred_element_type=jnp.float32)
        # Normalize after the PV matmul: (S, hd) multiply instead of (S, S).
        o = o * pl.reciprocal(denom, approx=True)
        outs.append(o.astype(jnp.bfloat16))
    o_ref[0] = outs[0] if len(outs) == 1 else jnp.concatenate(outs, axis=-1)
    # TODO(synk): for very long sequences switch to a flash-style KV-tile loop so the (S,S)
    # score buffer does not grow with S.


# ---------------------------------------------------------------------------
# Kernel 3: out-projection + residual + LayerNorm2 + streamed MLP + residual.
# Grid = (row-tile, intermediate-tile); the second axis is a reduction ('arbitrary').
# ---------------------------------------------------------------------------
def _proj_mlp_kernel(ctx_ref, x_ref, ow_ref, ob_ref, ln2w_ref, ln2b_ref,
                     f1w_ref, f1b_ref, f2w_ref, f2b_ref, o_ref, h2_ref, *, eps):
    @pl.when(pl.program_id(1) == 0)
    def _attn_out_and_ln2():
        x = x_ref[...]                                        # (ts, H) f32 residual
        attn = (jnp.dot(ctx_ref[...], ow_ref[...], preferred_element_type=jnp.float32)
                + ob_ref[...])
        x1 = x + attn                                         # residual 1
        mu = jnp.mean(x1, axis=-1, keepdims=True)
        var = jnp.mean((x1 - mu) ** 2, axis=-1, keepdims=True)
        h2 = (x1 - mu) * jax.lax.rsqrt(var + eps) * ln2w_ref[...] + ln2b_ref[...]
        h2_ref[...] = h2.astype(jnp.bfloat16)
        o_ref[...] = x1 + f2b_ref[...]                        # residual 2 + fc2 bias

    # MLP contribution of this intermediate tile (all grid steps, including j==0).
    t = (jnp.dot(h2_ref[...], f1w_ref[...], preferred_element_type=jnp.float32)
         + f1b_ref[...])
    t = t * jax.nn.sigmoid(1.702 * t)                         # quick_gelu (f32)
    # TODO(synk): only quick_gelu (CLIP default hidden_act) is implemented.
    o_ref[...] += jnp.dot(t.astype(jnp.bfloat16), f2w_ref[...],
                          preferred_element_type=jnp.float32)


# ---------------------------------------------------------------------------
# Wrappers.
# ---------------------------------------------------------------------------
def prepare_layer_params(p, *, num_heads):
    """One-time param transform: fuse QKV into (H,3H) bf16, fold attn scale into Q."""
    H = p["q_w"].shape[0]
    scale = (H // num_heads) ** -0.5
    bf16, f32 = jnp.bfloat16, jnp.float32
    row = lambda a: jnp.asarray(a, f32).reshape(1, -1)
    qkv_w = jnp.concatenate([jnp.asarray(p["q_w"], f32) * scale,
                             jnp.asarray(p["k_w"], f32),
                             jnp.asarray(p["v_w"], f32)], axis=1).astype(bf16)
    qkv_b = jnp.concatenate([row(p["q_b"]) * scale, row(p["k_b"]), row(p["v_b"])], axis=1)
    return {
        "ln1_w": row(p["ln1_w"]), "ln1_b": row(p["ln1_b"]),
        "qkv_w": qkv_w, "qkv_b": qkv_b,
        "out_w": jnp.asarray(p["out_w"], bf16), "out_b": row(p["out_b"]),
        "ln2_w": row(p["ln2_w"]), "ln2_b": row(p["ln2_b"]),
        "fc1_w": jnp.asarray(p["fc1_w"], bf16), "fc1_b": row(p["fc1_b"]),
        "fc2_w": jnp.asarray(p["fc2_w"], bf16), "fc2_b": row(p["fc2_b"]),
    }


def clip_encoder_layer(x2d, mask2d, p, *, batch, seq_pad, num_heads, eps,
                       row_tile, ffn_tile):
    """One CLIPEncoderLayer on the flattened (B*S_pad, H) f32 residual stream."""
    R, H = x2d.shape
    hd = H // num_heads
    inter = p["fc1_w"].shape[1]
    gw = _head_group_width(num_heads, hd)
    heads_per_group = gw // hd
    ngroups = num_heads // heads_per_group
    n_rows = R // row_tile
    n_ffn = inter // ffn_tile

    # ---- 1) LN1 + fused QKV (row-tiled, fully parallel) ----------------------
    const1 = lambda a: pl.BlockSpec(a.shape, lambda r, nd=a.ndim: (0,) * nd)
    q2d, k2d, v2d = pl.pallas_call(
        functools.partial(_ln_qkv_kernel, eps=eps, hidden=H),
        grid=(n_rows,),
        in_specs=[pl.BlockSpec((row_tile, H), lambda r: (r, 0)),
                  const1(p["ln1_w"]), const1(p["ln1_b"]),
                  const1(p["qkv_w"]), const1(p["qkv_b"])],
        out_specs=[pl.BlockSpec((row_tile, H), lambda r: (r, 0))] * 3,
        out_shape=[jax.ShapeDtypeStruct((R, H), jnp.bfloat16)] * 3,
        compiler_params=pltpu.CompilerParams(
            dimension_semantics=("parallel",), vmem_limit_bytes=_VMEM_LIMIT),
    )(x2d, p["ln1_w"], p["ln1_b"], p["qkv_w"], p["qkv_b"])

    # ---- 2) per-(batch, head-group) attention; no head transposes ------------
    def to3d(t):
        return t.reshape(batch, seq_pad, H)        # free reshape (no dim reorder)

    head_spec = pl.BlockSpec((1, seq_pad, gw), lambda b, g: (b, 0, g))
    ctx = pl.pallas_call(
        functools.partial(_attn_group_kernel, head_dim=hd, heads_per_group=heads_per_group),
        grid=(batch, ngroups),
        in_specs=[pl.BlockSpec((seq_pad, seq_pad), lambda b, g: (0, 0)),  # mask fetched once
                  head_spec, head_spec, head_spec],
        out_specs=head_spec,
        out_shape=jax.ShapeDtypeStruct((batch, seq_pad, H), jnp.bfloat16),
        compiler_params=pltpu.CompilerParams(
            dimension_semantics=("parallel", "parallel"), vmem_limit_bytes=_VMEM_LIMIT),
    )(mask2d, to3d(q2d), to3d(k2d), to3d(v2d))
    ctx2d = ctx.reshape(R, H)

    # ---- 3) out-proj + residual + LN2 + streamed MLP + residual --------------
    const2 = lambda a: pl.BlockSpec(a.shape, lambda r, j, nd=a.ndim: (0,) * nd)
    out = pl.pallas_call(
        functools.partial(_proj_mlp_kernel, eps=eps),
        grid=(n_rows, n_ffn),
        in_specs=[pl.BlockSpec((row_tile, H), lambda r, j: (r, 0)),   # ctx
                  pl.BlockSpec((row_tile, H), lambda r, j: (r, 0)),   # residual x
                  const2(p["out_w"]), const2(p["out_b"]),
                  const2(p["ln2_w"]), const2(p["ln2_b"]),
                  pl.BlockSpec((H, ffn_tile), lambda r, j: (0, j)),   # fc1 weight tile
                  pl.BlockSpec((1, ffn_tile), lambda r, j: (0, j)),   # fc1 bias tile
                  pl.BlockSpec((ffn_tile, H), lambda r, j: (j, 0)),   # fc2 weight tile
                  const2(p["fc2_b"])],
        out_specs=pl.BlockSpec((row_tile, H), lambda r, j: (r, 0)),
        out_shape=jax.ShapeDtypeStruct((R, H), jnp.float32),
        scratch_shapes=[pltpu.VMEM((row_tile, H), jnp.bfloat16)],
        compiler_params=pltpu.CompilerParams(
            dimension_semantics=("parallel", "arbitrary"), vmem_limit_bytes=_VMEM_LIMIT),
    )(ctx2d, x2d, p["out_w"], p["out_b"], p["ln2_w"], p["ln2_b"],
      p["fc1_w"], p["fc1_b"], p["fc2_w"], p["fc2_b"])
    return out


def clip_encoder(inputs_embeds, causal_attention_mask, layer_params, *,
                 num_heads, eps=1e-5, row_block=None, ffn_block=None):
    """CLIPEncoder.forward: loops the layers, returns last_hidden_state."""
    # TODO(synk): output_hidden_states / output_attentions / return_dict bookkeeping is
    # host-side tuple plumbing and is omitted; only last_hidden_state is returned.
    # TODO(synk): per-sample padding `attention_mask` is not supported; only the
    # batch-broadcast additive causal_attention_mask path is implemented.
    B, S, H = inputs_embeds.shape
    assert H % num_heads == 0
    S_pad = _round_up(S, 128)      # lane-align sequence; padded keys masked, padded rows dropped
    R = B * S_pad

    # (S_pad, S_pad) additive mask: real causal mask top-left, -1e9 on padded key columns.
    if causal_attention_mask is None:
        m = jnp.zeros((S, S), jnp.float32)
    else:
        m = jnp.asarray(causal_attention_mask, jnp.float32)
        m = m.reshape(-1, S, S)[0] if m.ndim > 2 else m
    mask2d = jnp.zeros((S_pad, S_pad), jnp.float32)
    mask2d = mask2d.at[:S, :S].set(m)
    mask2d = mask2d.at[:, S:].set(-1e9)

    prepped = [prepare_layer_params(p, num_heads=num_heads) for p in layer_params]
    inter = prepped[0]["fc1_w"].shape[1]

    # Tile selection (generation-aware via _VMEM_LIMIT).
    budget = _VMEM_LIMIT // 12
    row_cap = max(128, (budget // (H * 4)) // 128 * 128)
    row_tile = row_block if row_block else _largest_tile(R, row_cap, 128)
    assert R % row_tile == 0
    ffn_cap = 1024 if _VMEM_LIMIT >= 96 * 1024 * 1024 else 512
    ffn_tile = ffn_block if ffn_block else _largest_tile(inter, ffn_cap, 128)
    ffn_tile = min(ffn_tile, inter)
    assert inter % ffn_tile == 0

    x = jnp.pad(inputs_embeds.astype(jnp.float32), ((0, 0), (0, S_pad - S), (0, 0)))
    h2d = x.reshape(R, H)
    for p in prepped:
        h2d = clip_encoder_layer(h2d, mask2d, p, batch=B, seq_pad=S_pad,
                                 num_heads=num_heads, eps=eps,
                                 row_tile=row_tile, ffn_tile=ffn_tile)
    return h2d.reshape(B, S_pad, H)[:, :S, :]


# ---------------------------------------------------------------------------
# Deterministic parameter init + pure-JAX f32 reference for verification.
# ---------------------------------------------------------------------------
def init_layer_params(key, hidden, intermediate):
    def rnd(i, shape, scale=0.02):
        return scale * jax.random.normal(jax.random.fold_in(key, i), shape, jnp.float32)
    return {
        "ln1_w": jnp.ones((1, hidden), jnp.float32) + rnd(0, (1, hidden)),
        "ln1_b": rnd(1, (1, hidden)),
        "q_w": rnd(2, (hidden, hidden)),   "q_b": rnd(3, (1, hidden)),
        "k_w": rnd(4, (hidden, hidden)),   "k_b": rnd(5, (1, hidden)),
        "v_w": rnd(6, (hidden, hidden)),   "v_b": rnd(7, (1, hidden)),
        "out_w": rnd(8, (hidden, hidden)), "out_b": rnd(9, (1, hidden)),
        "ln2_w": jnp.ones((1, hidden), jnp.float32) + rnd(10, (1, hidden)),
        "ln2_b": rnd(11, (1, hidden)),
        "fc1_w": rnd(12, (hidden, intermediate)), "fc1_b": rnd(13, (1, intermediate)),
        "fc2_w": rnd(14, (intermediate, hidden)), "fc2_b": rnd(15, (1, hidden)),
    }


def ref_layer(x, mask, p, num_heads, eps=1e-5):
    B, S, H = x.shape
    hd = H // num_heads

    def ln(v, w, b):
        mu = v.mean(-1, keepdims=True)
        var = ((v - mu) ** 2).mean(-1, keepdims=True)
        return (v - mu) / jnp.sqrt(var + eps) * w + b

    h = ln(x, p["ln1_w"][0], p["ln1_b"][0])
    q = (h @ p["q_w"] + p["q_b"][0]) * hd ** -0.5
    k = h @ p["k_w"] + p["k_b"][0]
    v = h @ p["v_w"] + p["v_b"][0]
    qh = q.reshape(B, S, num_heads, hd).transpose(0, 2, 1, 3)
    kh = k.reshape(B, S, num_heads, hd).transpose(0, 2, 1, 3)
    vh = v.reshape(B, S, num_heads, hd).transpose(0, 2, 1, 3)
    s = jnp.einsum("bhqd,bhkd->bhqk", qh, kh) + mask
    a = jax.nn.softmax(s, axis=-1)
    o = jnp.einsum("bhqk,bhkd->bhqd", a, vh).transpose(0, 2, 1, 3).reshape(B, S, H)
    o = o @ p["out_w"] + p["out_b"][0]
    x = x + o
    h = ln(x, p["ln2_w"][0], p["ln2_b"][0])
    h = h @ p["fc1_w"] + p["fc1_b"][0]
    h = h * jax.nn.sigmoid(1.702 * h)
    h = h @ p["fc2_w"] + p["fc2_b"][0]
    return x + h


if __name__ == "__main__":
    # Small CLIP-like config chosen so all kernel code paths are exercised:
    # hd=64 -> 2 heads per 128-lane group (2 groups), 2 row blocks, 2 ffn tiles.
    B, S, H = 2, 8, 256
    num_heads = 4
    intermediate = 512
    num_layers = 2
    eps = 1e-5

    key = jax.random.PRNGKey(0)
    x = jax.random.normal(jax.random.fold_in(key, 1000), (B, S, H), jnp.float32)

    # Additive causal mask, (B, 1, S, S): 0 for visible, large negative otherwise.
    causal = jnp.where(jnp.arange(S)[None, :] <= jnp.arange(S)[:, None], 0.0, -1e9)
    causal4d = jnp.broadcast_to(causal.astype(jnp.float32), (B, 1, S, S))

    layer_params = [init_layer_params(jax.random.fold_in(key, l), H, intermediate)
                    for l in range(num_layers)]

    out = clip_encoder(x, causal4d, layer_params, num_heads=num_heads, eps=eps,
                       row_block=128, ffn_block=256)
    out = jax.block_until_ready(out)

    # Pure-JAX f32 reference for correctness (kernel uses bf16 matmul operands).
    ref = x
    for p in layer_params:
        ref = ref_layer(ref, causal4d, p, num_heads, eps)

    err = float(jnp.max(jnp.abs(out - ref)))
    assert out.shape == (B, S, H)
    assert jnp.allclose(out, ref, rtol=2e-2, atol=2e-2), f"max abs err {err}"
    print("KERNEL_OK")
</pallas_src>

<mosaic_0001>
module attributes {stable_mosaic.version = 11 : i64} {
  func.func @_ln_qkv_kernel(%arg0: i32, %arg1: memref<128x256xf32, #tpu.memory_space<vmem>>, %arg2: memref<1x256xf32, #tpu.memory_space<vmem>>, %arg3: memref<1x256xf32, #tpu.memory_space<vmem>>, %arg4: memref<256x768xbf16, #tpu.memory_space<vmem>>, %arg5: memref<1x768xf32, #tpu.memory_space<vmem>>, %arg6: memref<128x256xbf16, #tpu.memory_space<vmem>>, %arg7: memref<128x256xbf16, #tpu.memory_space<vmem>>, %arg8: memref<128x256xbf16, #tpu.memory_space<vmem>>) attributes {dimension_semantics = [#tpu.dimension_semantics<parallel>], iteration_bounds = array<i64: 2>, scalar_prefetch = 0 : i64, scratch_operands = 0 : i64, tpu.core_type = #tpu.core_type<tc>, window_params = [{transform_indices = @transform_0, window_bounds = array<i64: 128, 256>}, {pipeline_mode = #tpu.pipeline_mode<synchronous>, transform_indices = @transform_1, window_bounds = array<i64: 1, 256>}, {pipeline_mode = #tpu.pipeline_mode<synchronous>, transform_indices = @transform_2, window_bounds = array<i64: 1, 256>}, {pipeline_mode = #tpu.pipeline_mode<synchronous>, transform_indices = @transform_3, window_bounds = array<i64: 256, 768>}, {pipeline_mode = #tpu.pipeline_mode<synchronous>, transform_indices = @transform_4, window_bounds = array<i64: 1, 768>}, {transform_indices = @transform_5, window_bounds = array<i64: 128, 256>}, {transform_indices = @transform_6, window_bounds = array<i64: 128, 256>}, {transform_indices = @transform_7, window_bounds = array<i64: 128, 256>}]} {
    %c0 = arith.constant 0 : index
    %c0_0 = arith.constant 0 : index
    %0 = vector.load %arg1[%c0, %c0_0] : memref<128x256xf32, #tpu.memory_space<vmem>>, vector<128x256xf32>
    %cst = arith.constant dense<0.000000e+00> : vector<128xf32>
    %1 = vector.multi_reduction <add>, %0, %cst [1] : vector<128x256xf32> to vector<128xf32>
    %2 = vector.shape_cast %1 : vector<128xf32> to vector<128x1xf32>
    %cst_1 = arith.constant 2.560000e+02 : f32
    %3 = vector.broadcast %cst_1 : f32 to vector<128x1xf32>
    %4 = arith.divf %2, %3 : vector<128x1xf32>
    %5 = vector.broadcast %4 : vector<128x1xf32> to vector<128x256xf32>
    %6 = arith.subf %0, %5 : vector<128x256xf32>
    %7 = arith.mulf %6, %6 : vector<128x256xf32>
    %cst_2 = arith.constant dense<0.000000e+00> : vector<128xf32>
    %8 = vector.multi_reduction <add>, %7, %cst_2 [1] : vector<128x256xf32> to vector<128xf32>
    %9 = vector.shape_cast %8 : vector<128xf32> to vector<128x1xf32>
    %cst_3 = arith.constant 2.560000e+02 : f32
    %10 = vector.broadcast %cst_3 : f32 to vector<128x1xf32>
    %11 = arith.divf %9, %10 : vector<128x1xf32>
    %12 = vector.broadcast %4 : vector<128x1xf32> to vector<128x256xf32>
    %13 = arith.subf %0, %12 : vector<128x256xf32>
    %cst_4 = arith.constant 9.99999974E-6 : f32
    %14 = vector.broadcast %cst_4 : f32 to vector<128x1xf32>
    %15 = arith.addf %11, %14 : vector<128x1xf32>
    %16 = math.rsqrt %15 : vector<128x1xf32>
    %17 = vector.broadcast %16 : vector<128x1xf32> to vector<128x256xf32>
    %18 = arith.mulf %13, %17 : vector<128x256xf32>
    %c0_5 = arith.constant 0 : index
    %c0_6 = arith.constant 0 : index
    %19 = vector.load %arg2[%c0_5, %c0_6] : memref<1x256xf32, #tpu.memory_space<vmem>>, vector<1x256xf32>
    %20 = vector.broadcast %19 : vector<1x256xf32> to vector<128x256xf32>
    %21 = arith.mulf %18, %20 : vector<128x256xf32>
    %c0_7 = arith.constant 0 : index
    %c0_8 = arith.constant 0 : index
    %22 = vector.load %arg3[%c0_7, %c0_8] : memref<1x256xf32, #tpu.memory_space<vmem>>, vector<1x256xf32>
    %23 = vector.broadcast %22 : vector<1x256xf32> to vector<128x256xf32>
    %24 = arith.addf %21, %23 : vector<128x256xf32>
    %25 = arith.truncf %24 : vector<128x256xf32> to vector<128x256xbf16>
    %c0_9 = arith.constant 0 : index
    %c0_10 = arith.constant 0 : index
    %26 = vector.load %arg4[%c0_9, %c0_10] : memref<256x768xbf16, #tpu.memory_space<vmem>>, vector<256x768xbf16>
    %cst_11 = arith.constant dense<0.000000e+00> : vector<128x768xf32>
    %27 = tpu.matmul %25, %26, %cst_11 {dimension_numbers = #tpu.dot_dimension_numbers<[1], [0], [0], [1], [0, 0, 1, 1], [], []>} : vector<128x256xbf16>, vector<256x768xbf16>, vector<128x768xf32> -> vector<128x768xf32>
    %c0_12 = arith.constant 0 : index
    %c0_13 = arith.constant 0 : index
    %28 = vector.load %arg5[%c0_12, %c0_13] : memref<1x768xf32, #tpu.memory_space<vmem>>, vector<1x768xf32>
    %29 = vector.broadcast %28 : vector<1x768xf32> to vector<128x768xf32>
    %30 = arith.addf %27, %29 : vector<128x768xf32>
    %31 = vector.extract_strided_slice %30 {offsets = [0, 0], sizes = [128, 256], strides = [1, 1]} : vector<128x768xf32> to vector<128x256xf32>
    %32 = arith.truncf %31 : vector<128x256xf32> to vector<128x256xbf16>
    %c0_14 = arith.constant 0 : index
    %c0_15 = arith.constant 0 : index
    %33 = vector.load %arg6[%c0_14, %c0_15] : memref<128x256xbf16, #tpu.memory_space<vmem>>, vector<128x256xbf16>
    tpu.vector_store %arg6[%c0_14, %c0_15], %32 {strides = array<i32>} : memref<128x256xbf16, #tpu.memory_space<vmem>>, vector<128x256xbf16>,
    %34 = vector.extract_strided_slice %30 {offsets = [0, 256], sizes = [128, 256], strides = [1, 1]} : vector<128x768xf32> to vector<128x256xf32>
    %35 = arith.truncf %34 : vector<128x256xf32> to vector<128x256xbf16>
    %c0_16 = arith.constant 0 : index
    %c0_17 = arith.constant 0 : index
    %36 = vector.load %arg7[%c0_16, %c0_17] : memref<128x256xbf16, #tpu.memory_space<vmem>>, vector<128x256xbf16>
    tpu.vector_store %arg7[%c0_16, %c0_17], %35 {strides = array<i32>} : memref<128x256xbf16, #tpu.memory_space<vmem>>, vector<128x256xbf16>,
    %37 = vector.extract_strided_slice %30 {offsets = [0, 512], sizes = [128, 256], strides = [1, 1]} : vector<128x768xf32> to vector<128x256xf32>
    %38 = arith.truncf %37 : vector<128x256xf32> to vector<128x256xbf16>
    %c0_18 = arith.constant 0 : index
    %c0_19 = arith.constant 0 : index
    %39 = vector.load %arg8[%c0_18, %c0_19] : memref<128x256xbf16, #tpu.memory_space<vmem>>, vector<128x256xbf16>
    tpu.vector_store %arg8[%c0_18, %c0_19], %38 {strides = array<i32>} : memref<128x256xbf16, #tpu.memory_space<vmem>>, vector<128x256xbf16>,
    return
  }
  func.func @transform_0(%arg0: i32) -> (i32, i32) {
    %c0_i32 = arith.constant 0 : i32
    %c0_i32_0 = arith.constant 0 : i32
    return %arg0, %c0_i32 : i32, i32
  }
  func.func @transform_1(%arg0: i32) -> (i32, i32) {
    %c0_i32 = arith.constant 0 : i32
    %c0_i32_0 = arith.constant 0 : i32
    %c0_i32_1 = arith.constant 0 : i32
    return %c0_i32, %c0_i32_0 : i32, i32
  }
  func.func @transform_2(%arg0: i32) -> (i32, i32) {
    %c0_i32 = arith.constant 0 : i32
    %c0_i32_0 = arith.constant 0 : i32
    %c0_i32_1 = arith.constant 0 : i32
    return %c0_i32, %c0_i32_0 : i32, i32
  }
  func.func @transform_3(%arg0: i32) -> (i32, i32) {
    %c0_i32 = arith.constant 0 : i32
    %c0_i32_0 = arith.constant 0 : i32
    %c0_i32_1 = arith.constant 0 : i32
    return %c0_i32, %c0_i32_0 : i32, i32
  }
  func.func @transform_4(%arg0: i32) -> (i32, i32) {
    %c0_i32 = arith.constant 0 : i32
    %c0_i32_0 = arith.constant 0 : i32
    %c0_i32_1 = arith.constant 0 : i32
    return %c0_i32, %c0_i32_0 : i32, i32
  }
  func.func @transform_5(%arg0: i32) -> (i32, i32) {
    %c0_i32 = arith.constant 0 : i32
    %c0_i32_0 = arith.constant 0 : i32
    return %arg0, %c0_i32 : i32, i32
  }
  func.func @transform_6(%arg0: i32) -> (i32, i32) {
    %c0_i32 = arith.constant 0 : i32
    %c0_i32_0 = arith.constant 0 : i32
    return %arg0, %c0_i32 : i32, i32
  }
  func.func @transform_7(%arg0: i32) -> (i32, i32) {
    %c0_i32 = arith.constant 0 : i32
    %c0_i32_0 = arith.constant 0 : i32
    return %arg0, %c0_i32 : i32, i32
  }
}

</mosaic_0001>

<llo_original>
// kernel: tpu_custom_call.1
$region0: #{tpu_custom_call.1}
  #allocation0 [shape = 'u32[]', space=smem, size = 0x4, offset = 0x4, fixed_abs, tag = 'smem constant byte address 0x4 - core index']
  #allocation1 [shape = 'u32[72,128]{1,0:T(1,128)}', space=vmem, size = 0x9000, scoped, tag = 'internal scratch']
  %s0 = inlined_call_operand.hbm [shape: f32[256,256], index: 0, kind: input, shape index: {}]
  %s1 = inlined_call_operand.hbm [shape: f32[1,256], index: 1, kind: input, shape index: {}]
  %s2 = inlined_call_operand.hbm [shape: f32[1,256], index: 2, kind: input, shape index: {}]
  %s3 = inlined_call_operand.hbm [shape: bf16[256,768], index: 3, kind: input, shape index: {}]
  %s4 = inlined_call_operand.hbm [shape: f32[1,768], index: 4, kind: input, shape index: {}]
  %s5 = inlined_call_operand.hbm [shape: bf16[256,256], index: 5, kind: output, shape index: {0}]
  %s6 = inlined_call_operand.hbm [shape: bf16[256,256], index: 6, kind: output, shape index: {1}]
  %s7 = inlined_call_operand.hbm [shape: bf16[256,256], index: 7, kind: output, shape index: {2}]
  %8 = xla_tuple %s5, %s6, %s7
  %s9 = sld [smem:[#allocation0]]
  $region89: #{tpu_custom_call.1} parent=0
    _
  %s11 = ssub.s32 1, %s9
  %s12 = scalar_select 0, %s11, %s9
  $region1: #{tpu_custom_call.1} parent=0
    #allocation2 [shape = 'u8[262144]{0}', space=vmem, size = 0x40000, scoped, tag = 'input window, operand 0']
    #allocation3 [shape = 's32[2]{0}', space=sflag, size = 0x8, scoped, tag = 'scoped memory for tpu_custom_call.1']
    #allocation4 [shape = 's32[2]{0}', space=sflag, size = 0x8, scoped, tag = 'scoped memory for tpu_custom_call.1']
    #allocation5 [shape = 'u8[1024]{0}', space=vmem, size = 0x400, scoped, tag = 'input window, operand 1, single buffered']
    #allocation6 [shape = 's32[1]{0}', space=sflag, size = 0x4, scoped, tag = 'scoped memory for tpu_custom_call.1']
    #allocation7 [shape = 'u8[1024]{0}', space=vmem, size = 0x400, scoped, tag = 'input window, operand 2, single buffered']
    #allocation8 [shape = 'u8[393216]{0}', space=vmem, size = 0x60000, scoped, tag = 'input window, operand 3, single buffered']
    #allocation9 [shape = 's32[1]{0}', space=sflag, size = 0x4, scoped, tag = 'scoped memory for tpu_custom_call.1']
    #allocation10 [shape = 'u8[3072]{0}', space=vmem, size = 0xc00, scoped, tag = 'input window, operand 4, single buffered']
    #allocation11 [shape = 'u8[131072]{0}', space=vmem, size = 0x20000, scoped, tag = 'output window, operand 0']
    #allocation12 [shape = 'u8[131072]{0}', space=vmem, size = 0x20000, scoped, tag = 'output window, operand 1']
    #allocation13 [shape = 's32[2]{0}', space=sflag, size = 0x8, scoped, tag = 'scoped memory for tpu_custom_call.1']
    #allocation14 [shape = 'u8[131072]{0}', space=vmem, size = 0x20000, scoped, tag = 'output window, operand 2']
    %13 = vsyncpa [#allocation3], 0
    %s14 = scalar_lea.sflag [#allocation3], 1
    %15 = vsyncpa %s14, 0
    %16 = vsyncpa [#allocation6], 0
    %17 = vsyncpa [#allocation9], 0
    %18 = vsyncpa [#allocation4], 0
    %s19 = scalar_lea.sflag [#allocation4], 1
    %20 = vsyncpa %s19, 0
    %21 = vsyncpa [#allocation13], 0
    %s22 = scalar_lea.sflag [#allocation13], 1
    %23 = vsyncpa %s22, 0
    loop: start=0, step=1, limit=4
    $region2: #{tpu_custom_call.1} parent=1 // loop_pre_header
      _
    $region3: #{tpu_custom_call.1} parent=1 // loop_header
      %s25 = sphi 0, %s29
      %p26 = scmp.ge.s32.totalorder %s25, 4
      %s35 = sphi 0, %s37
      %s38 = sphi 0, %s35
      %s39 = sphi 0, %s38
      %s55 = sphi 0, %s39
      %s59 = sphi 0, %s59
      %s61 = sphi 0, %s59
      %s62 = sphi 0, %s61
      %s76 = sphi 0, %s62
      %s80 = sphi 0, %s80
      %s82 = sphi 0, %s80
      %s83 = sphi 0, %s82
      %s97 = sphi 0, %s83
      %s101 = sphi 0, %s101
      %s103 = sphi 0, %s101
      %s104 = sphi 0, %s103
      %s118 = sphi 0, %s104
      %s122 = sphi 0, %s122
      %s124 = sphi 0, %s122
      %s125 = sphi 0, %s124
      %s139 = sphi 0, %s125
      %s145 = sphi 0, %s147
      %s148 = sphi 0, %s145
      %s149 = sphi 0, %s148
      %s165 = sphi 0, %s149
      %s171 = sphi 0, %s173
      %s174 = sphi 0, %s171
      %s175 = sphi 0, %s174
      %s191 = sphi 0, %s175
      %s197 = sphi 0, %s199
      %s200 = sphi 0, %s197
      %s201 = sphi 0, %s200
      %s217 = sphi 0, %s201
    $region4: #{tpu_custom_call.1} parent=1 // loop_header_branch
      %28 = sbr.rel (%p26) target = $region8
    $region5: #{tpu_custom_call.1} parent=1 // loop_body
      %s30 = ssub.s32 %s25, 1
      %s31 = ssub.s32 %s25, 2
      %s32 = sadd.s32 %s25, 1
      %s33 = ssub.s32 %s25, %s32
      %p34 = scmp.eq.s32.totalorder %s33, 0
      %s36 = sadd.s32 %s35, 1
      %s37 = scalar_select %p34, %s35, %s36
      %p40 = pneg %p34
      %p41 = scmp.eq.s32.totalorder %s25, 1
      %p42 = por %p40, %p41
      %p43 = scmp.ne.s32.totalorder %s35, %s38
      %p44 = scmp.eq.s32.totalorder %s25, 0
      %p45 = por %p43, %p44
      %p46 = scmp.ne.s32.totalorder %s35, %s38
      %p47 = scmp.eq.s32.totalorder %s30, 1
      %p48 = por %p46, %p47
      %p49 = scmp.ne.s32.totalorder %s38, %s39
      %p50 = scmp.eq.s32.totalorder %s30, 0
      %p51 = por %p49, %p50
      %p52 = scmp.ne.s32.totalorder %s38, %s39
      %p53 = scmp.eq.s32.totalorder %s31, 1
      %p54 = por %p52, %p53
      %p56 = scmp.ne.s32.totalorder %s39, %s55
      %p57 = scmp.eq.s32.totalorder %s31, 0
      %p58 = por %p56, %p57
      %s60 = sadd.s32 %s59, 1
      %p63 = scmp.eq.s32.totalorder %s25, 1
      %p64 = scmp.ne.s32.totalorder %s59, %s61
      %p65 = scmp.eq.s32.totalorder %s25, 0
      %p66 = por %p64, %p65
      %p67 = scmp.ne.s32.totalorder %s59, %s61
      %p68 = scmp.eq.s32.totalorder %s30, 1
      %p69 = por %p67, %p68
      %p70 = scmp.ne.s32.totalorder %s61, %s62
      %p71 = scmp.eq.s32.totalorder %s30, 0
      %p72 = por %p70, %p71
      %p73 = scmp.ne.s32.totalorder %s61, %s62
      %p74 = scmp.eq.s32.totalorder %s31, 1
      %p75 = por %p73, %p74
      %p77 = scmp.ne.s32.totalorder %s62, %s76
      %p78 = scmp.eq.s32.totalorder %s31, 0
      %p79 = por %p77, %p78
      %s81 = sadd.s32 %s80, 1
      %p84 = scmp.eq.s32.totalorder %s25, 1
      %p85 = scmp.ne.s32.totalorder %s80, %s82
      %p86 = scmp.eq.s32.totalorder %s25, 0
      %p87 = por %p85, %p86
      %p88 = scmp.ne.s32.totalorder %s80, %s82
      %p89 = scmp.eq.s32.totalorder %s30, 1
      %p90 = por %p88, %p89
      %p91 = scmp.ne.s32.totalorder %s82, %s83
      %p92 = scmp.eq.s32.totalorder %s30, 0
      %p93 = por %p91, %p92
      %p94 = scmp.ne.s32.totalorder %s82, %s83
      %p95 = scmp.eq.s32.totalorder %s31, 1
      %p96 = por %p94, %p95
      %p98 = scmp.ne.s32.totalorder %s83, %s97
      %p99 = scmp.eq.s32.totalorder %s31, 0
      %p100 = por %p98, %p99
      %s102 = sadd.s32 %s101, 1
      %p105 = scmp.eq.s32.totalorder %s25, 1
      %p106 = scmp.ne.s32.totalorder %s101, %s103
      %p107 = scmp.eq.s32.totalorder %s25, 0
      %p108 = por %p106, %p107
      %p109 = scmp.ne.s32.totalorder %s101, %s103
      %p110 = scmp.eq.s32.totalorder %s30, 1
      %p111 = por %p109, %p110
      %p112 = scmp.ne.s32.totalorder %s103, %s104
      %p113 = scmp.eq.s32.totalorder %s30, 0
      %p114 = por %p112, %p113
      %p115 = scmp.ne.s32.totalorder %s103, %s104
      %p116 = scmp.eq.s32.totalorder %s31, 1
      %p117 = por %p115, %p116
      %p119 = scmp.ne.s32.totalorder %s104, %s118
      %p120 = scmp.eq.s32.totalorder %s31, 0
      %p121 = por %p119, %p120
      %s123 = sadd.s32 %s122, 1
      %p126 = scmp.eq.s32.totalorder %s25, 1
      %p127 = scmp.ne.s32.totalorder %s122, %s124
      %p128 = scmp.eq.s32.totalorder %s25, 0
      %p129 = por %p127, %p128
      %p130 = scmp.ne.s32.totalorder %s122, %s124
      %p131 = scmp.eq.s32.totalorder %s30, 1
      %p132 = por %p130, %p131
      %p133 = scmp.ne.s32.totalorder %s124, %s125
      %p134 = scmp.eq.s32.totalorder %s30, 0
      %p135 = por %p133, %p134
      %p136 = scmp.ne.s32.totalorder %s124, %s125
      %p137 = scmp.eq.s32.totalorder %s31, 1
      %p138 = por %p136, %p137
      %p140 = scmp.ne.s32.totalorder %s125, %s139
      %p141 = scmp.eq.s32.totalorder %s31, 0
      %p142 = por %p140, %p141
      %s143 = ssub.s32 %s25, %s32
      %p144 = scmp.eq.s32.totalorder %s143, 0
      %s146 = sadd.s32 %s145, 1
      %s147 = scalar_select %p144, %s145, %s146
      %p150 = pneg %p144
      %p151 = scmp.eq.s32.totalorder %s25, 1
      %p152 = por %p150, %p151
      %p153 = scmp.ne.s32.totalorder %s145, %s148
      %p154 = scmp.eq.s32.totalorder %s25, 0
      %p155 = por %p153, %p154
      %p156 = scmp.ne.s32.totalorder %s145, %s148
      %p157 = scmp.eq.s32.totalorder %s30, 1
      %p158 = por %p156, %p157
      %p159 = scmp.ne.s32.totalorder %s148, %s149
      %p160 = scmp.eq.s32.totalorder %s30, 0
      %p161 = por %p159, %p160
      %p162 = scmp.ne.s32.totalorder %s148, %s149
      %p163 = scmp.eq.s32.totalorder %s31, 1
      %p164 = por %p162, %p163
      %p166 = scmp.ne.s32.totalorder %s149, %s165
      %p167 = scmp.eq.s32.totalorder %s31, 0
      %p168 = por %p166, %p167
      %s169 = ssub.s32 %s25, %s32
      %p170 = scmp.eq.s32.totalorder %s169, 0
      %s172 = sadd.s32 %s171, 1
      %s173 = scalar_select %p170, %s171, %s172
      %p176 = pneg %p170
      %p177 = scmp.eq.s32.totalorder %s25, 1
      %p178 = por %p176, %p177
      %p179 = scmp.ne.s32.totalorder %s171, %s174
      %p180 = scmp.eq.s32.totalorder %s25, 0
      %p181 = por %p179, %p180
      %p182 = scmp.ne.s32.totalorder %s171, %s174
      %p183 = scmp.eq.s32.totalorder %s30, 1
      %p184 = por %p182, %p183
      %p185 = scmp.ne.s32.totalorder %s174, %s175
      %p186 = scmp.eq.s32.totalorder %s30, 0
      %p187 = por %p185, %p186
      %p188 = scmp.ne.s32.totalorder %s174, %s175
      %p189 = scmp.eq.s32.totalorder %s31, 1
      %p190 = por %p188, %p189
      %p192 = scmp.ne.s32.totalorder %s175, %s191
      %p193 = scmp.eq.s32.totalorder %s31, 0
      %p194 = por %p192, %p193
      %s195 = ssub.s32 %s25, %s32
      %p196 = scmp.eq.s32.totalorder %s195, 0
      %s198 = sadd.s32 %s197, 1
      %s199 = scalar_select %p196, %s197, %s198
      %p202 = pneg %p196
      %p203 = scmp.eq.s32.totalorder %s25, 1
      %p204 = por %p202, %p203
      %p205 = scmp.ne.s32.totalorder %s197, %s200
      %p206 = scmp.eq.s32.totalorder %s25, 0
      %p207 = por %p205, %p206
      %p208 = scmp.ne.s32.totalorder %s197, %s200
      %p209 = scmp.eq.s32.totalorder %s30, 1
      %p210 = por %p208, %p209
      %p211 = scmp.ne.s32.totalorder %s200, %s201
      %p212 = scmp.eq.s32.totalorder %s30, 0
      %p213 = por %p211, %p212
      %p214 = scmp.ne.s32.totalorder %s200, %s201
      %p215 = scmp.eq.s32.totalorder %s31, 1
      %p216 = por %p214, %p215
      %p218 = scmp.ne.s32.totalorder %s201, %s217
      %p219 = scmp.eq.s32.totalorder %s31, 0
      %p220 = por %p218, %p219
      %p221 = scmp.le.s32.totalorder 1, %s25
      %p222 = scmp.lt.s32.totalorder %s25, 3
      %p223 = pnand %p221, %p222
      %p224 = pneg %p223
      // Predicated region
      $region9: #{tpu_custom_call.1} parent=5 // pred_check
        _
      $region10: #{tpu_custom_call.1} parent=5 // pred_check_branch
        %226 = sbr.rel (%p223) target = $region12
      $region11: #{tpu_custom_call.1} parent=5 // pred_region
        %s227 = ssub.s32 %s25, 1
        // Predicated region
        $region13: #{tpu_custom_call.1} parent=11 // pred_check
          %p228 = pneg %p72
        $region14: #{tpu_custom_call.1} parent=11 // pred_check_branch
          %230 = sbr.rel (%p228) target = $region16
        $region15: #{tpu_custom_call.1} parent=11 // pred_region
          %232 = vsyncadd [#allocation6], 0
          %s234 = sshll.u32 %s1, 4
          %s235 = int_to_ptr.hbm [resolvable:$true] %s234
          %s236 = sshll.u32 [#allocation5], 4
          %s237 = int_to_ptr.vmem [resolvable:$true] %s236
          %239 = dma.hbm_to_vmem [thread:$0]  %s235, 32, %s237, [#allocation6]
        $region16: #{tpu_custom_call.1} parent=11 // pred_fallthru
          _
        // Predicated region
        $region17: #{tpu_custom_call.1} parent=11 // pred_check
          %p240 = pneg %p93
        $region18: #{tpu_custom_call.1} parent=11 // pred_check_branch
          %242 = sbr.rel (%p240) target = $region20
        $region19: #{tpu_custom_call.1} parent=11 // pred_region
          %244 = vsyncadd [#allocation6], 0
          %s246 = sshll.u32 %s2, 4
          %s247 = int_to_ptr.hbm [resolvable:$true] %s246
          %s248 = sshll.u32 [#allocation7], 4
          %s249 = int_to_ptr.vmem [resolvable:$true] %s248
          %251 = dma.hbm_to_vmem [thread:$0]  %s247, 32, %s249, [#allocation6]
        $region20: #{tpu_custom_call.1} parent=11 // pred_fallthru
          _
        // Predicated region
        $region21: #{tpu_custom_call.1} parent=11 // pred_check
          %p252 = pneg %p114
        $region22: #{tpu_custom_call.1} parent=11 // pred_check_branch
          %254 = sbr.rel (%p252) target = $region24
        $region23: #{tpu_custom_call.1} parent=11 // pred_region
          %256 = vsyncadd [#allocation9], 0
          %s257 = sshll.u32 %s3, 4
          %s258 = int_to_ptr.hbm [resolvable:$true] %s257
          %s259 = sshll.u32 [#allocation8], 4
          %s260 = int_to_ptr.vmem [resolvable:$true] %s259
          %265 = dma.hbm_to_vmem [thread:$0]  %s258, 12288, %s260, [#allocation9], 384, 384, 24
        $region24: #{tpu_custom_call.1} parent=11 // pred_fallthru
          _
        // Predicated region
        $region25: #{tpu_custom_call.1} parent=11 // pred_check
          %p266 = pneg %p135
        $region26: #{tpu_custom_call.1} parent=11 // pred_check_branch
          %268 = sbr.rel (%p266) target = $region28
        $region27: #{tpu_custom_call.1} parent=11 // pred_region
          %270 = vsyncadd [#allocation9], 0
          %s272 = sshll.u32 %s4, 4
          %s273 = int_to_ptr.hbm [resolvable:$true] %s272
          %s274 = sshll.u32 [#allocation10], 4
          %s275 = int_to_ptr.vmem [resolvable:$true] %s274
          %277 = dma.hbm_to_vmem [thread:$0]  %s273, 96, %s275, [#allocation9]
        $region28: #{tpu_custom_call.1} parent=11 // pred_fallthru
          _
      $region12: #{tpu_custom_call.1} parent=5 // pred_fallthru
        _
      %p278 = scmp.lt.s32.totalorder %s25, 2
      // Predicated region
      $region29: #{tpu_custom_call.1} parent=5 // pred_check
        %p279 = pneg %p278
      $region30: #{tpu_custom_call.1} parent=5 // pred_check_branch
        %281 = sbr.rel (%p279) target = $region32
      $region31: #{tpu_custom_call.1} parent=5 // pred_region
        // Predicated region
        $region33: #{tpu_custom_call.1} parent=31 // pred_check
          %p282 = pneg %p45
        $region34: #{tpu_custom_call.1} parent=31 // pred_check_branch
          %284 = sbr.rel (%p282) target = $region36
        $region35: #{tpu_custom_call.1} parent=31 // pred_region
          %s285 = sand.u32 %s35, 1
          %s286 = scalar_lea.sflag [#allocation3], %s285
          %s287 = sand.u32 %s35, 1
          %s288 = smul.addr %s287, 256
          %s289 = scalar_lea.vmem [#allocation2], %s288
          %s290 = smul.u32 16, %s25
          %292 = vsyncadd %s286, 0
          %s293 = smul.addr %s290, 2
          %s294 = smul.addr %s293, 8
          %s295 = scalar_lea.hbm %s0, %s294
          %s296 = sshll.u32 %s295, 4
          %s297 = int_to_ptr.hbm [resolvable:$true] %s296
          %s298 = sshll.u32 %s289, 4
          %s299 = int_to_ptr.vmem [resolvable:$true] %s298
          %304 = dma.hbm_to_vmem [thread:$0]  %s297, 4096, %s299, %s286, 256, 256, 16
        $region36: #{tpu_custom_call.1} parent=31 // pred_fallthru
          _
      $region32: #{tpu_custom_call.1} parent=5 // pred_fallthru
        _
      %p305 = scmp.le.s32.totalorder 1, %s25
      %p306 = scmp.lt.s32.totalorder %s25, 3
      %p307 = pnand %p305, %p306
      %p308 = pneg %p307
      // Predicated region
      $region37: #{tpu_custom_call.1} parent=5 // pred_check
        _
      $region38: #{tpu_custom_call.1} parent=5 // pred_check_branch
        %310 = sbr.rel (%p307) target = $region40
      $region39: #{tpu_custom_call.1} parent=5 // pred_region
        %s311 = ssub.s32 %s25, 1
        %s312 = sand.u32 %s38, 1
        %s313 = scalar_lea.sflag [#allocation3], %s312
        %s314 = sand.u32 %s38, 1
        %s315 = smul.addr %s314, 256
        %s316 = scalar_lea.vmem [#allocation2], %s315
        // Predicated region
        $region41: #{tpu_custom_call.1} parent=39 // pred_check
          %p317 = pneg %p51
        $region42: #{tpu_custom_call.1} parent=39 // pred_check_branch
          %319 = sbr.rel (%p317) target = $region44
        $region43: #{tpu_custom_call.1} parent=39 // pred_region
          %321 = dma.done %s313, 4096
        $region44: #{tpu_custom_call.1} parent=39 // pred_fallthru
          _
        // Predicated region
        $region45: #{tpu_custom_call.1} parent=39 // pred_check
          %p322 = pneg %p72
        $region46: #{tpu_custom_call.1} parent=39 // pred_check_branch
          %324 = sbr.rel (%p322) target = $region48
        $region47: #{tpu_custom_call.1} parent=39 // pred_region
          %326 = dma.done [#allocation6], 32
        $region48: #{tpu_custom_call.1} parent=39 // pred_fallthru
          _
        // Predicated region
        $region49: #{tpu_custom_call.1} parent=39 // pred_check
          %p327 = pneg %p93
        $region50: #{tpu_custom_call.1} parent=39 // pred_check_branch
          %329 = sbr.rel (%p327) target = $region52
        $region51: #{tpu_custom_call.1} parent=39 // pred_region
          %331 = dma.done [#allocation6], 32
        $region52: #{tpu_custom_call.1} parent=39 // pred_fallthru
          _
        // Predicated region
        $region53: #{tpu_custom_call.1} parent=39 // pred_check
          %p332 = pneg %p114
        $region54: #{tpu_custom_call.1} parent=39 // pred_check_branch
          %334 = sbr.rel (%p332) target = $region56
        $region55: #{tpu_custom_call.1} parent=39 // pred_region
          %336 = dma.done [#allocation9], 12288
        $region56: #{tpu_custom_call.1} parent=39 // pred_fallthru
          _
        // Predicated region
        $region57: #{tpu_custom_call.1} parent=39 // pred_check
          %p337 = pneg %p135
        $region58: #{tpu_custom_call.1} parent=39 // pred_check_branch
          %339 = sbr.rel (%p337) target = $region60
        $region59: #{tpu_custom_call.1} parent=39 // pred_region
          %341 = dma.done [#allocation9], 96
        $region60: #{tpu_custom_call.1} parent=39 // pred_fallthru
          _
        %s342 = sand.u32 %s38, 1
        %s343 = scalar_lea.sflag [#allocation3], %s342
        %s344 = sand.u32 %s38, 1
        %s345 = smul.addr %s344, 256
        %s346 = scalar_lea.vmem [#allocation2], %s345
        %p347 = pneg %p51
        %p348 = pneg %p48
        %p349 = pneg %p72
        %p350 = pneg %p69
        %p351 = pneg %p93
        %p352 = pneg %p90
        %p353 = pneg %p114
        %p354 = pneg %p111
        %p355 = pneg %p135
        %p356 = pneg %p132
        %p357 = pneg %p161
        %p358 = pneg %p158
        %s359 = sand.u32 %s148, 1
        %s360 = scalar_lea.sflag [#allocation4], %s359
        %s361 = sand.u32 %s148, 1
        %s362 = smul.addr %s361, 128
        %s363 = scalar_lea.vmem [#allocation11], %s362
        %p364 = pneg %p187
        %p365 = pneg %p184
        %s366 = sand.u32 %s30, 1
        %s367 = scalar_lea.sflag [#allocation13], %s366
        %s368 = sand.u32 %s174, 1
        %s369 = smul.addr %s368, 128
        %s370 = scalar_lea.vmem [#allocation12], %s369
        %p371 = pneg %p213
        %p372 = pneg %p210
        %s373 = sand.u32 %s30, 1
        %s374 = scalar_lea.sflag [#allocation13], %s373
        %s375 = sand.u32 %s200, 1
        %s376 = smul.addr %s375, 128
        %s377 = scalar_lea.vmem [#allocation14], %s376
        %s378 = smul.u32 16, %s30
        %s379 = smul.u32 16, %s30
        %s380 = smul.u32 16, %s30
        %s381 = smul.u32 16, %s30
        %v382 = vld [vmem:[%s316] sm:$0xff]
        %v383 = vld [vmem:[%s316 + $0x8] sm:$0xff]
        %v384 = vld [vmem:[%s316 + $0x10] sm:$0xff]
        %v385 = vld [vmem:[%s316 + $0x18] sm:$0xff]
        %v386 = vld [vmem:[%s316 + $0x20] sm:$0xff]
        %v387 = vld [vmem:[%s316 + $0x28] sm:$0xff]
        %v388 = vld [vmem:[%s316 + $0x30] sm:$0xff]
        %v389 = vld [vmem:[%s316 + $0x38] sm:$0xff]
        %v390 = vld [vmem:[%s316 + $0x40] sm:$0xff]
        %v391 = vld [vmem:[%s316 + $0x48] sm:$0xff]
        %v392 = vld [vmem:[%s316 + $0x50] sm:$0xff]
        %v393 = vld [vmem:[%s316 + $0x58] sm:$0xff]
        %v394 = vld [vmem:[%s316 + $0x60] sm:$0xff]
        %v395 = vld [vmem:[%s316 + $0x68] sm:$0xff]
        %v396 = vld [vmem:[%s316 + $0x70] sm:$0xff]
        %v397 = vld [vmem:[%s316 + $0x78] sm:$0xff]
        %v398 = vld [vmem:[%s316 + $0x80] sm:$0xff]
        %v399 = vld [vmem:[%s316 + $0x88] sm:$0xff]
        %v400 = vld [vmem:[%s316 + $0x90] sm:$0xff]
        %v401 = vld [vmem:[%s316 + $0x98] sm:$0xff]
        %v402 = vld [vmem:[%s316 + $0xa0] sm:$0xff]
        %v403 = vld [vmem:[%s316 + $0xa8] sm:$0xff]
        %v404 = vld [vmem:[%s316 + $0xb0] sm:$0xff]
        %v405 = vld [vmem:[%s316 + $0xb8] sm:$0xff]
        %v406 = vld [vmem:[%s316 + $0xc0] sm:$0xff]
        %v407 = vld [vmem:[%s316 + $0xc8] sm:$0xff]
        %v408 = vld [vmem:[%s316 + $0xd0] sm:$0xff]
        %v409 = vld [vmem:[%s316 + $0xd8] sm:$0xff]
        %v410 = vld [vmem:[%s316 + $0xe0] sm:$0xff]
        %v411 = vld [vmem:[%s316 + $0xe8] sm:$0xff]
        %v412 = vld [vmem:[%s316 + $0xf0] sm:$0xff]
        %v413 = vld [vmem:[%s316 + $0xf8] sm:$0xff]
        %v414 = vadd.f32 %v382, %v383
        %415 = vadd.xlane.f32.xlu0 %v414
        %v416 = vpop.xlane.xlu0 %415
        %v417 = vadd.f32 %v384, %v385
        %418 = vadd.xlane.f32.xlu0 %v417
        %v419 = vpop.xlane.xlu0 %418
        %v420 = vadd.f32 %v386, %v387
        %421 = vadd.xlane.f32.xlu0 %v420
        %v422 = vpop.xlane.xlu0 %421
        %v423 = vadd.f32 %v388, %v389
        %424 = vadd.xlane.f32.xlu0 %v423
        %v425 = vpop.xlane.xlu0 %424
        %v426 = vadd.f32 %v390, %v391
        %427 = vadd.xlane.f32.xlu0 %v426
        %v428 = vpop.xlane.xlu0 %427
        %v429 = vadd.f32 %v392, %v393
        %430 = vadd.xlane.f32.xlu0 %v429
        %v431 = vpop.xlane.xlu0 %430
        %v432 = vadd.f32 %v394, %v395
        %433 = vadd.xlane.f32.xlu0 %v432
        %v434 = vpop.xlane.xlu0 %433
        %v435 = vadd.f32 %v396, %v397
        %436 = vadd.xlane.f32.xlu0 %v435
        %v437 = vpop.xlane.xlu0 %436
        %v438 = vadd.f32 %v398, %v399
        %439 = vadd.xlane.f32.xlu0 %v438
        %v440 = vpop.xlane.xlu0 %439
        %v441 = vadd.f32 %v400, %v401
        %442 = vadd.xlane.f32.xlu0 %v441
        %v443 = vpop.xlane.xlu0 %442
        %v444 = vadd.f32 %v402, %v403
        %445 = vadd.xlane.f32.xlu0 %v444
        %v446 = vpop.xlane.xlu0 %445
        %v447 = vadd.f32 %v404, %v405
        %448 = vadd.xlane.f32.xlu0 %v447
        %v449 = vpop.xlane.xlu0 %448
        %v450 = vadd.f32 %v406, %v407
        %451 = vadd.xlane.f32.xlu0 %v450
        %v452 = vpop.xlane.xlu0 %451
        %v453 = vadd.f32 %v408, %v409
        %454 = vadd.xlane.f32.xlu0 %v453
        %v455 = vpop.xlane.xlu0 %454
        %v456 = vadd.f32 %v410, %v411
        %457 = vadd.xlane.f32.xlu0 %v456
        %v458 = vpop.xlane.xlu0 %457
        %v459 = vadd.f32 %v412, %v413
        %460 = vadd.xlane.f32.xlu0 %v459
        %v461 = vpop.xlane.xlu0 %460
        %v462 = vrcp.pop 256.0
        %v463 = vmul.f32 256.0, %v462
        %v464 = vsub.f32 1.0, %v463
        %v465 = vmul.f32 %v462, %v464
        %v466 = vadd.f32 %v462, %v465
        %vm467 = vweird.f32 %v462
        %v468 = vsel %vm467, %v462, %v466
        %v469 = vmul.f32 %v416, %v468
        %v470 = vmul.f32 %v419, %v468
        %v471 = vmul.f32 %v422, %v468
        %v472 = vmul.f32 %v425, %v468
        %v473 = vmul.f32 %v428, %v468
        %v474 = vmul.f32 %v431, %v468
        %v475 = vmul.f32 %v434, %v468
        %v476 = vmul.f32 %v437, %v468
        %v477 = vmul.f32 %v440, %v468
        %v478 = vmul.f32 %v443, %v468
        %v479 = vmul.f32 %v446, %v468
        %v480 = vmul.f32 %v449, %v468
        %v481 = vmul.f32 %v452, %v468
        %v482 = vmul.f32 %v455, %v468
        %v483 = vmul.f32 %v458, %v468
        %v484 = vmul.f32 %v461, %v468
        %v485 = vsub.f32 %v382, %v469
        %v486 = vsub.f32 %v383, %v469
        %v487 = vsub.f32 %v384, %v470
        %v488 = vsub.f32 %v385, %v470
        %v489 = vsub.f32 %v386, %v471
        %v490 = vsub.f32 %v387, %v471
        %v491 = vsub.f32 %v388, %v472
        %v492 = vsub.f32 %v389, %v472
        %v493 = vsub.f32 %v390, %v473
        %v494 = vsub.f32 %v391, %v473
        %v495 = vsub.f32 %v392, %v474
        %v496 = vsub.f32 %v393, %v474
        %v497 = vsub.f32 %v394, %v475
        %v498 = vsub.f32 %v395, %v475
        %v499 = vsub.f32 %v396, %v476
        %v500 = vsub.f32 %v397, %v476
        %v501 = vsub.f32 %v398, %v477
        %v502 = vsub.f32 %v399, %v477
        %v503 = vsub.f32 %v400, %v478
        %v504 = vsub.f32 %v401, %v478
        %v505 = vsub.f32 %v402, %v479
        %v506 = vsub.f32 %v403, %v479
        %v507 = vsub.f32 %v404, %v480
        %v508 = vsub.f32 %v405, %v480
        %v509 = vsub.f32 %v406, %v481
        %v510 = vsub.f32 %v407, %v481
        %v511 = vsub.f32 %v408, %v482
        %v512 = vsub.f32 %v409, %v482
        %v513 = vsub.f32 %v410, %v483
        %v514 = vsub.f32 %v411, %v483
        %v515 = vsub.f32 %v412, %v484
        %v516 = vsub.f32 %v413, %v484
        %v517 = vmul.f32 %v485, %v485
        %v518 = vmul.f32 %v486, %v486
        %v519 = vmul.f32 %v487, %v487
        %v520 = vmul.f32 %v488, %v488
        %v521 = vmul.f32 %v489, %v489
        %v522 = vmul.f32 %v490, %v490
        %v523 = vmul.f32 %v491, %v491
        %v524 = vmul.f32 %v492, %v492
        %v525 = vmul.f32 %v493, %v493
        %v526 = vmul.f32 %v494, %v494
        %v527 = vmul.f32 %v495, %v495
        %v528 = vmul.f32 %v496, %v496
        %v529 = vmul.f32 %v497, %v497
        %v530 = vmul.f32 %v498, %v498
        %v531 = vmul.f32 %v499, %v499
        %v532 = vmul.f32 %v500, %v500
        %v533 = vmul.f32 %v501, %v501
        %v534 = vmul.f32 %v502, %v502
        %v535 = vmul.f32 %v503, %v503
        %v536 = vmul.f32 %v504, %v504
        %v537 = vmul.f32 %v505, %v505
        %v538 = vmul.f32 %v506, %v506
        %v539 = vmul.f32 %v507, %v507
        %v540 = vmul.f32 %v508, %v508
        %v541 = vmul.f32 %v509, %v509
        %v542 = vmul.f32 %v510, %v510
        %v543 = vmul.f32 %v511, %v511
        %v544 = vmul.f32 %v512, %v512
        %v545 = vmul.f32 %v513, %v513
        %v546 = vmul.f32 %v514, %v514
        %v547 = vmul.f32 %v515, %v515
        %v548 = vmul.f32 %v516, %v516
        %v549 = vadd.f32 %v517, %v518
        %550 = vadd.xlane.f32.xlu0 %v549
        %v551 = vpop.xlane.xlu0 %550
        %v552 = vadd.f32 %v519, %v520
        %553 = vadd.xlane.f32.xlu0 %v552
        %v554 = vpop.xlane.xlu0 %553
        %v555 = vadd.f32 %v521, %v522
        %556 = vadd.xlane.f32.xlu0 %v555
        %v557 = vpop.xlane.xlu0 %556
        %v558 = vadd.f32 %v523, %v524
        %559 = vadd.xlane.f32.xlu0 %v558
        %v560 = vpop.xlane.xlu0 %559
        %v561 = vadd.f32 %v525, %v526
        %562 = vadd.xlane.f32.xlu0 %v561
        %v563 = vpop.xlane.xlu0 %562
        %v564 = vadd.f32 %v527, %v528
        %565 = vadd.xlane.f32.xlu0 %v564
        %v566 = vpop.xlane.xlu0 %565
        %v567 = vadd.f32 %v529, %v530
        %568 = vadd.xlane.f32.xlu0 %v567
        %v569 = vpop.xlane.xlu0 %568
        %v570 = vadd.f32 %v531, %v532
        %571 = vadd.xlane.f32.xlu0 %v570
        %v572 = vpop.xlane.xlu0 %571
        %v573 = vadd.f32 %v533, %v534
        %574 = vadd.xlane.f32.xlu0 %v573
        %v575 = vpop.xlane.xlu0 %574
        %v576 = vadd.f32 %v535, %v536
        %577 = vadd.xlane.f32.xlu0 %v576
        %v578 = vpop.xlane.xlu0 %577
        %v579 = vadd.f32 %v537, %v538
        %580 = vadd.xlane.f32.xlu0 %v579
        %v581 = vpop.xlane.xlu0 %580
        %v582 = vadd.f32 %v539, %v540
        %583 = vadd.xlane.f32.xlu0 %v582
        %v584 = vpop.xlane.xlu0 %583
        %v585 = vadd.f32 %v541, %v542
        %586 = vadd.xlane.f32.xlu0 %v585
        %v587 = vpop.xlane.xlu0 %586
        %v588 = vadd.f32 %v543, %v544
        %589 = vadd.xlane.f32.xlu0 %v588
        %v590 = vpop.xlane.xlu0 %589
        %v591 = vadd.f32 %v545, %v546
        %592 = vadd.xlane.f32.xlu0 %v591
        %v593 = vpop.xlane.xlu0 %592
        %v594 = vadd.f32 %v547, %v548
        %595 = vadd.xlane.f32.xlu0 %v594
        %v596 = vpop.xlane.xlu0 %595
        %v597 = vmul.f32 %v551, %v468
        %v598 = vmul.f32 %v554, %v468
        %v599 = vmul.f32 %v557, %v468
        %v600 = vmul.f32 %v560, %v468
        %v601 = vmul.f32 %v563, %v468
        %v602 = vmul.f32 %v566, %v468
        %v603 = vmul.f32 %v569, %v468
        %v604 = vmul.f32 %v572, %v468
        %v605 = vmul.f32 %v575, %v468
        %v606 = vmul.f32 %v578, %v468
        %v607 = vmul.f32 %v581, %v468
        %v608 = vmul.f32 %v584, %v468
        %v609 = vmul.f32 %v587, %v468
        %v610 = vmul.f32 %v590, %v468
        %v611 = vmul.f32 %v593, %v468
        %v612 = vmul.f32 %v596, %v468
        %v613 = vadd.f32 %v597, 1e-05
        %v614 = vadd.f32 %v598, 1e-05
        %v615 = vadd.f32 %v599, 1e-05
        %v616 = vadd.f32 %v600, 1e-05
        %v617 = vadd.f32 %v601, 1e-05
        %v618 = vadd.f32 %v602, 1e-05
        %v619 = vadd.f32 %v603, 1e-05
        %v620 = vadd.f32 %v604, 1e-05
        %v621 = vadd.f32 %v605, 1e-05
        %v622 = vadd.f32 %v606, 1e-05
        %v623 = vadd.f32 %v607, 1e-05
        %v624 = vadd.f32 %v608, 1e-05
        %v625 = vadd.f32 %v609, 1e-05
        %v626 = vadd.f32 %v610, 1e-05
        %v627 = vadd.f32 %v611, 1e-05
        %v628 = vadd.f32 %v612, 1e-05
        %v629 = vrsqrt.pop %v613
        %v630 = vmul.f32 %v629, %v613
        %v631 = vmul.f32 %v630, %v629
        %v632 = vmul.f32 0.5, %v631
        %v633 = vsub.f32 1.5, %v632
        %v634 = vmul.f32 %v629, %v633
        %vm635 = vweird.f32 %v613
        %vm636 = vweird.f32 %v629
        %vm637 = vmor %vm635, %vm636
        %v638 = vsel %vm637, %v629, %v634
        %v639 = vrsqrt.pop %v614
        %v640 = vmul.f32 %v639, %v614
        %v641 = vmul.f32 %v640, %v639
        %v642 = vmul.f32 0.5, %v641
        %v643 = vsub.f32 1.5, %v642
        %v644 = vmul.f32 %v639, %v643
        %vm645 = vweird.f32 %v614
        %vm646 = vweird.f32 %v639
        %vm647 = vmor %vm645, %vm646
        %v648 = vsel %vm647, %v639, %v644
        %v649 = vrsqrt.pop %v615
        %v650 = vmul.f32 %v649, %v615
        %v651 = vmul.f32 %v650, %v649
        %v652 = vmul.f32 0.5, %v651
        %v653 = vsub.f32 1.5, %v652
        %v654 = vmul.f32 %v649, %v653
        %vm655 = vweird.f32 %v615
        %vm656 = vweird.f32 %v649
        %vm657 = vmor %vm655, %vm656
        %v658 = vsel %vm657, %v649, %v654
        %v659 = vrsqrt.pop %v616
        %v660 = vmul.f32 %v659, %v616
        %v661 = vmul.f32 %v660, %v659
        %v662 = vmul.f32 0.5, %v661
        %v663 = vsub.f32 1.5, %v662
        %v664 = vmul.f32 %v659, %v663
        %vm665 = vweird.f32 %v616
        %vm666 = vweird.f32 %v659
        %vm667 = vmor %vm665, %vm666
        %v668 = vsel %vm667, %v659, %v664
        %v669 = vrsqrt.pop %v617
        %v670 = vmul.f32 %v669, %v617
        %v671 = vmul.f32 %v670, %v669
        %v672 = vmul.f32 0.5, %v671
        %v673 = vsub.f32 1.5, %v672
        %v674 = vmul.f32 %v669, %v673
        %vm675 = vweird.f32 %v617
        %vm676 = vweird.f32 %v669
        %vm677 = vmor %vm675, %vm676
        %v678 = vsel %vm677, %v669, %v674
        %v679 = vrsqrt.pop %v618
        %v680 = vmul.f32 %v679, %v618
        %v681 = vmul.f32 %v680, %v679
        %v682 = vmul.f32 0.5, %v681
        %v683 = vsub.f32 1.5, %v682
        %v684 = vmul.f32 %v679, %v683
        %vm685 = vweird.f32 %v618
        %vm686 = vweird.f32 %v679
        %vm687 = vmor %vm685, %vm686
        %v688 = vsel %vm687, %v679, %v684
        %v689 = vrsqrt.pop %v619
        %v690 = vmul.f32 %v689, %v619
        %v691 = vmul.f32 %v690, %v689
        %v692 = vmul.f32 0.5, %v691
        %v693 = vsub.f32 1.5, %v692
        %v694 = vmul.f32 %v689, %v693
        %vm695 = vweird.f32 %v619
        %vm696 = vweird.f32 %v689
        %vm697 = vmor %vm695, %vm696
        %v698 = vsel %vm697, %v689, %v694
        %v699 = vrsqrt.pop %v620
        %v700 = vmul.f32 %v699, %v620
        %v701 = vmul.f32 %v700, %v699
        %v702 = vmul.f32 0.5, %v701
        %v703 = vsub.f32 1.5, %v702
        %v704 = vmul.f32 %v699, %v703
        %vm705 = vweird.f32 %v620
        %vm706 = vweird.f32 %v699
        %vm707 = vmor %vm705, %vm706
        %v708 = vsel %vm707, %v699, %v704
        %v709 = vrsqrt.pop %v621
        %v710 = vmul.f32 %v709, %v621
        %v711 = vmul.f32 %v710, %v709
        %v712 = vmul.f32 0.5, %v711
        %v713 = vsub.f32 1.5, %v712
        %v714 = vmul.f32 %v709, %v713
        %vm715 = vweird.f32 %v621
        %vm716 = vweird.f32 %v709
        %vm717 = vmor %vm715, %vm716
        %v718 = vsel %vm717, %v709, %v714
        %v719 = vrsqrt.pop %v622
        %v720 = vmul.f32 %v719, %v622
        %v721 = vmul.f32 %v720, %v719
        %v722 = vmul.f32 0.5, %v721
        %v723 = vsub.f32 1.5, %v722
        %v724 = vmul.f32 %v719, %v723
        %vm725 = vweird.f32 %v622
        %vm726 = vweird.f32 %v719
        %vm727 = vmor %vm725, %vm726
        %v728 = vsel %vm727, %v719, %v724
        %v729 = vrsqrt.pop %v623
        %v730 = vmul.f32 %v729, %v623
        %v731 = vmul.f32 %v730, %v729
        %v732 = vmul.f32 0.5, %v731
        %v733 = vsub.f32 1.5, %v732
        %v734 = vmul.f32 %v729, %v733
        %vm735 = vweird.f32 %v623
        %vm736 = vweird.f32 %v729
        %vm737 = vmor %vm735, %vm736
        %v738 = vsel %vm737, %v729, %v734
        %v739 = vrsqrt.pop %v624
        %v740 = vmul.f32 %v739, %v624
        %v741 = vmul.f32 %v740, %v739
        %v742 = vmul.f32 0.5, %v741
        %v743 = vsub.f32 1.5, %v742
        %v744 = vmul.f32 %v739, %v743
        %vm745 = vweird.f32 %v624
        %vm746 = vweird.f32 %v739
        %vm747 = vmor %vm745, %vm746
        %v748 = vsel %vm747, %v739, %v744
        %v749 = vrsqrt.pop %v625
        %v750 = vmul.f32 %v749, %v625
        %v751 = vmul.f32 %v750, %v749
        %v752 = vmul.f32 0.5, %v751
        %v753 = vsub.f32 1.5, %v752
        %v754 = vmul.f32 %v749, %v753
        %vm755 = vweird.f32 %v625
        %vm756 = vweird.f32 %v749
        %vm757 = vmor %vm755, %vm756
        %v758 = vsel %vm757, %v749, %v754
        %v759 = vrsqrt.pop %v626
        %v760 = vmul.f32 %v759, %v626
        %v761 = vmul.f32 %v760, %v759
        %v762 = vmul.f32 0.5, %v761
        %v763 = vsub.f32 1.5, %v762
        %v764 = vmul.f32 %v759, %v763
        %vm765 = vweird.f32 %v626
        %vm766 = vweird.f32 %v759
        %vm767 = vmor %vm765, %vm766
        %v768 = vsel %vm767, %v759, %v764
        %v769 = vrsqrt.pop %v627
        %v770 = vmul.f32 %v769, %v627
        %v771 = vmul.f32 %v770, %v769
        %v772 = vmul.f32 0.5, %v771
        %v773 = vsub.f32 1.5, %v772
        %v774 = vmul.f32 %v769, %v773
        %vm775 = vweird.f32 %v627
        %vm776 = vweird.f32 %v769
        %vm777 = vmor %vm775, %vm776
        %v778 = vsel %vm777, %v769, %v774
        %v779 = vrsqrt.pop %v628
        %v780 = vmul.f32 %v779, %v628
        %v781 = vmul.f32 %v780, %v779
        %v782 = vmul.f32 0.5, %v781
        %v783 = vsub.f32 1.5, %v782
        %v784 = vmul.f32 %v779, %v783
        %vm785 = vweird.f32 %v628
        %vm786 = vweird.f32 %v779
        %vm787 = vmor %vm785, %vm786
        %v788 = vsel %vm787, %v779, %v784
        %v789 = vmul.f32 %v485, %v638
        %v790 = vmul.f32 %v486, %v638
        %v791 = vmul.f32 %v487, %v648
        %v792 = vmul.f32 %v488, %v648
        %v793 = vmul.f32 %v489, %v658
        %v794 = vmul.f32 %v490, %v658
        %v795 = vmul.f32 %v491, %v668
        %v796 = vmul.f32 %v492, %v668
        %v797 = vmul.f32 %v493, %v678
        %v798 = vmul.f32 %v494, %v678
        %v799 = vmul.f32 %v495, %v688
        %v800 = vmul.f32 %v496, %v688
        %v801 = vmul.f32 %v497, %v698
        %v802 = vmul.f32 %v498, %v698
        %v803 = vmul.f32 %v499, %v708
        %v804 = vmul.f32 %v500, %v708
        %v805 = vmul.f32 %v501, %v718
        %v806 = vmul.f32 %v502, %v718
        %v807 = vmul.f32 %v503, %v728
        %v808 = vmul.f32 %v504, %v728
        %v809 = vmul.f32 %v505, %v738
        %v810 = vmul.f32 %v506, %v738
        %v811 = vmul.f32 %v507, %v748
        %v812 = vmul.f32 %v508, %v748
        %v813 = vmul.f32 %v509, %v758
        %v814 = vmul.f32 %v510, %v758
        %v815 = vmul.f32 %v511, %v768
        %v816 = vmul.f32 %v512, %v768
        %v817 = vmul.f32 %v513, %v778
        %v818 = vmul.f32 %v514, %v778
        %v819 = vmul.f32 %v515, %v788
        %v820 = vmul.f32 %v516, %v788
        %v821 = vld [vmem:[#allocation5] sm:$0x3]
        %v823 = vperm.slane %v821, 0
        %v824 = vperm.slane %v821, 1
        %v827 = vmul.f32 %v789, %v823
        %v828 = vmul.f32 %v790, %v824
        %v829 = vmul.f32 %v791, %v823
        %v830 = vmul.f32 %v792, %v824
        %v831 = vmul.f32 %v793, %v823
        %v832 = vmul.f32 %v794, %v824
        %v833 = vmul.f32 %v795, %v823
        %v834 = vmul.f32 %v796, %v824
        %v835 = vmul.f32 %v797, %v823
        %v836 = vmul.f32 %v798, %v824
        %v837 = vmul.f32 %v799, %v823
        %v838 = vmul.f32 %v800, %v824
        %v839 = vmul.f32 %v801, %v823
        %v840 = vmul.f32 %v802, %v824
        %v841 = vmul.f32 %v803, %v823
        %v842 = vmul.f32 %v804, %v824
        %v843 = vmul.f32 %v805, %v823
        %v844 = vmul.f32 %v806, %v824
        %v845 = vmul.f32 %v807, %v823
        %v846 = vmul.f32 %v808, %v824
        %v847 = vmul.f32 %v809, %v823
        %v848 = vmul.f32 %v810, %v824
        %v849 = vmul.f32 %v811, %v823
        %v850 = vmul.f32 %v812, %v824
        %v851 = vmul.f32 %v813, %v823
        %v852 = vmul.f32 %v814, %v824
        %v853 = vmul.f32 %v815, %v823
        %v854 = vmul.f32 %v816, %v824
        %v855 = vmul.f32 %v817, %v823
        %v856 = vmul.f32 %v818, %v824
        %v857 = vmul.f32 %v819, %v823
        %v858 = vmul.f32 %v820, %v824
        %v859 = vld [vmem:[#allocation7] sm:$0x3]
        %v861 = vperm.slane %v859, 0
        %v862 = vperm.slane %v859, 1
        %v865 = vadd.f32 %v827, %v861
        %v866 = vadd.f32 %v828, %v862
        %v867 = vadd.f32 %v829, %v861
        %v868 = vadd.f32 %v830, %v862
        %v869 = vadd.f32 %v831, %v861
        %v870 = vadd.f32 %v832, %v862
        %v871 = vadd.f32 %v833, %v861
        %v872 = vadd.f32 %v834, %v862
        %v873 = vadd.f32 %v835, %v861
        %v874 = vadd.f32 %v836, %v862
        %v875 = vadd.f32 %v837, %v861
        %v876 = vadd.f32 %v838, %v862
        %v877 = vadd.f32 %v839, %v861
        %v878 = vadd.f32 %v840, %v862
        %v879 = vadd.f32 %v841, %v861
        %v880 = vadd.f32 %v842, %v862
        %v881 = vadd.f32 %v843, %v861
        %v882 = vadd.f32 %v844, %v862
        %v883 = vadd.f32 %v845, %v861
        %v884 = vadd.f32 %v846, %v862
        %v885 = vadd.f32 %v847, %v861
        %v886 = vadd.f32 %v848, %v862
        %v887 = vadd.f32 %v849, %v861
        %v888 = vadd.f32 %v850, %v862
        %v889 = vadd.f32 %v851, %v861
        %v890 = vadd.f32 %v852, %v862
        %v891 = vadd.f32 %v853, %v861
        %v892 = vadd.f32 %v854, %v862
        %v893 = vadd.f32 %v855, %v861
        %v894 = vadd.f32 %v856, %v862
        %v895 = vadd.f32 %v857, %v861
        %v896 = vadd.f32 %v858, %v862
        %v897 = vpack.c.bf16 %v867, %v865
        %v898 = vpack.c.bf16 %v868, %v866
        %v899 = vpack.c.bf16 %v871, %v869
        %v900 = vpack.c.bf16 %v872, %v870
        %v901 = vpack.c.bf16 %v875, %v873
        %v902 = vpack.c.bf16 %v876, %v874
        %v903 = vpack.c.bf16 %v879, %v877
        %v904 = vpack.c.bf16 %v880, %v878
        %v905 = vpack.c.bf16 %v883, %v881
        %v906 = vpack.c.bf16 %v884, %v882
        %v907 = vpack.c.bf16 %v887, %v885
        %v908 = vpack.c.bf16 %v888, %v886
        %v909 = vpack.c.bf16 %v891, %v889
        %v910 = vpack.c.bf16 %v892, %v890
        %v911 = vpack.c.bf16 %v895, %v893
        %v912 = vpack.c.bf16 %v896, %v894
        %v913 = vld [vmem:[#allocation8] sm:$0xff]
        %v914 = vld [vmem:[#allocation8 + $0x8] sm:$0xff]
        %v915 = vld [vmem:[#allocation8 + $0x10] sm:$0xff]
        %v916 = vld [vmem:[#allocation8 + $0x18] sm:$0xff]
        %v917 = vld [vmem:[#allocation8 + $0x20] sm:$0xff]
        %v918 = vld [vmem:[#allocation8 + $0x28] sm:$0xff]
        %v919 = vld [vmem:[#allocation8 + $0x30] sm:$0xff]
        %v920 = vld [vmem:[#allocation8 + $0x38] sm:$0xff]
        %v921 = vld [vmem:[#allocation8 + $0x40] sm:$0xff]
        %v922 = vld [vmem:[#allocation8 + $0x48] sm:$0xff]
        %v923 = vld [vmem:[#allocation8 + $0x50] sm:$0xff]
        %v924 = vld [vmem:[#allocation8 + $0x58] sm:$0xff]
        %v925 = vld [vmem:[#allocation8 + $0x60] sm:$0xff]
        %v926 = vld [vmem:[#allocation8 + $0x68] sm:$0xff]
        %v927 = vld [vmem:[#allocation8 + $0x70] sm:$0xff]
        %v928 = vld [vmem:[#allocation8 + $0x78] sm:$0xff]
        %v929 = vld [vmem:[#allocation8 + $0x80] sm:$0xff]
        %v930 = vld [vmem:[#allocation8 + $0x88] sm:$0xff]
        %v931 = vld [vmem:[#allocation8 + $0x90] sm:$0xff]
        %v932 = vld [vmem:[#allocation8 + $0x98] sm:$0xff]
        %v933 = vld [vmem:[#allocation8 + $0xa0] sm:$0xff]
        %v934 = vld [vmem:[#allocation8 + $0xa8] sm:$0xff]
        %v935 = vld [vmem:[#allocation8 + $0xb0] sm:$0xff]
        %v936 = vld [vmem:[#allocation8 + $0xb8] sm:$0xff]
        %v937 = vld [vmem:[#allocation8 + $0xc0] sm:$0xff]
        %v938 = vld [vmem:[#allocation8 + $0xc8] sm:$0xff]
        %v939 = vld [vmem:[#allocation8 + $0xd0] sm:$0xff]
        %v940 = vld [vmem:[#allocation8 + $0xd8] sm:$0xff]
        %v941 = vld [vmem:[#allocation8 + $0xe0] sm:$0xff]
        %v942 = vld [vmem:[#allocation8 + $0xe8] sm:$0xff]
        %v943 = vld [vmem:[#allocation8 + $0xf0] sm:$0xff]
        %v944 = vld [vmem:[#allocation8 + $0xf8] sm:$0xff]
        %v945 = vld [vmem:[#allocation8 + $0x100] sm:$0xff]
        %v946 = vld [vmem:[#allocation8 + $0x108] sm:$0xff]
        %v947 = vld [vmem:[#allocation8 + $0x110] sm:$0xff]
        %v948 = vld [vmem:[#allocation8 + $0x118] sm:$0xff]
        %v949 = vld [vmem:[#allocation8 + $0x120] sm:$0xff]
        %v950 = vld [vmem:[#allocation8 + $0x128] sm:$0xff]
        %v951 = vld [vmem:[#allocation8 + $0x130] sm:$0xff]
        %v952 = vld [vmem:[#allocation8 + $0x138] sm:$0xff]
        %v953 = vld [vmem:[#allocation8 + $0x140] sm:$0xff]
        %v954 = vld [vmem:[#allocation8 + $0x148] sm:$0xff]
        %v955 = vld [vmem:[#allocation8 + $0x150] sm:$0xff]
        %v956 = vld [vmem:[#allocation8 + $0x158] sm:$0xff]
        %v957 = vld [vmem:[#allocation8 + $0x160] sm:$0xff]
        %v958 = vld [vmem:[#allocation8 + $0x168] sm:$0xff]
        %v959 = vld [vmem:[#allocation8 + $0x170] sm:$0xff]
        %v960 = vld [vmem:[#allocation8 + $0x178] sm:$0xff]
        %v961 = vld [vmem:[#allocation8 + $0x180] sm:$0xff]
        %v962 = vld [vmem:[#allocation8 + $0x188] sm:$0xff]
        %v963 = vld [vmem:[#allocation8 + $0x190] sm:$0xff]
        %v964 = vld [vmem:[#allocation8 + $0x198] sm:$0xff]
        %v965 = vld [vmem:[#allocation8 + $0x1a0] sm:$0xff]
        %v966 = vld [vmem:[#allocation8 + $0x1a8] sm:$0xff]
        %v967 = vld [vmem:[#allocation8 + $0x1b0] sm:$0xff]
        %v968 = vld [vmem:[#allocation8 + $0x1b8] sm:$0xff]
        %v969 = vld [vmem:[#allocation8 + $0x1c0] sm:$0xff]
        %v970 = vld [vmem:[#allocation8 + $0x1c8] sm:$0xff]
        %v971 = vld [vmem:[#allocation8 + $0x1d0] sm:$0xff]
        %v972 = vld [vmem:[#allocation8 + $0x1d8] sm:$0xff]
        %v973 = vld [vmem:[#allocation8 + $0x1e0] sm:$0xff]
        %v974 = vld [vmem:[#allocation8 + $0x1e8] sm:$0xff]
        %v975 = vld [vmem:[#allocation8 + $0x1f0] sm:$0xff]
        %v976 = vld [vmem:[#allocation8 + $0x1f8] sm:$0xff]
        %v977 = vld [vmem:[#allocation8 + $0x200] sm:$0xff]
        %v978 = vld [vmem:[#allocation8 + $0x208] sm:$0xff]
        %v979 = vld [vmem:[#allocation8 + $0x210] sm:$0xff]
        %v980 = vld [vmem:[#allocation8 + $0x218] sm:$0xff]
        %v981 = vld [vmem:[#allocation8 + $0x220] sm:$0xff]
        %v982 = vld [vmem:[#allocation8 + $0x228] sm:$0xff]
        %v983 = vld [vmem:[#allocation8 + $0x230] sm:$0xff]
        %v984 = vld [vmem:[#allocation8 + $0x238] sm:$0xff]
        %v985 = vld [vmem:[#allocation8 + $0x240] sm:$0xff]
        %v986 = vld [vmem:[#allocation8 + $0x248] sm:$0xff]
        %v987 = vld [vmem:[#allocation8 + $0x250] sm:$0xff]
        %v988 = vld [vmem:[#allocation8 + $0x258] sm:$0xff]
        %v989 = vld [vmem:[#allocation8 + $0x260] sm:$0xff]
        %v990 = vld [vmem:[#allocation8 + $0x268] sm:$0xff]
        %v991 = vld [vmem:[#allocation8 + $0x270] sm:$0xff]
        %v992 = vld [vmem:[#allocation8 + $0x278] sm:$0xff]
        %v993 = vld [vmem:[#allocation8 + $0x280] sm:$0xff]
        %v994 = vld [vmem:[#allocation8 + $0x288] sm:$0xff]
        %v995 = vld [vmem:[#allocation8 + $0x290] sm:$0xff]
        %v996 = vld [vmem:[#allocation8 + $0x298] sm:$0xff]
        %v997 = vld [vmem:[#allocation8 + $0x2a0] sm:$0xff]
        %v998 = vld [vmem:[#allocation8 + $0x2a8] sm:$0xff]
        %v999 = vld [vmem:[#allocation8 + $0x2b0] sm:$0xff]
        %v1000 = vld [vmem:[#allocation8 + $0x2b8] sm:$0xff]
        %v1001 = vld [vmem:[#allocation8 + $0x2c0] sm:$0xff]
        %v1002 = vld [vmem:[#allocation8 + $0x2c8] sm:$0xff]
        %v1003 = vld [vmem:[#allocation8 + $0x2d0] sm:$0xff]
        %v1004 = vld [vmem:[#allocation8 + $0x2d8] sm:$0xff]
        %v1005 = vld [vmem:[#allocation8 + $0x2e0] sm:$0xff]
        %v1006 = vld [vmem:[#allocation8 + $0x2e8] sm:$0xff]
        %v1007 = vld [vmem:[#allocation8 + $0x2f0] sm:$0xff]
        %v1008 = vld [vmem:[#allocation8 + $0x2f8] sm:$0xff]
        %v1009 = vld [vmem:[#allocation10] sm:$0x3f]
        %v1011 = vperm.slane %v1009, 0
        %v1012 = vperm.slane %v1009, 1
        %v1013 = vperm.slane %v1009, 2
        %v1014 = vperm.slane %v1009, 3
        %v1015 = vperm.slane %v1009, 4
        %v1016 = vperm.slane %v1009, 5
        %v1119 = vunpack.c.l.b16 %v913
        %v1120 = vunpack.c.h.b16 %v913
        %v1121 = vunpack.c.l.b16 %v914
        %v1122 = vunpack.c.h.b16 %v914
        %v1123 = vunpack.c.l.b16 %v915
        %v1124 = vunpack.c.h.b16 %v915
        %v1125 = vunpack.c.l.b16 %v916
        %v1126 = vunpack.c.h.b16 %v916
        %v1127 = vunpack.c.l.b16 %v917
        %v1128 = vunpack.c.h.b16 %v917
        %v1129 = vunpack.c.l.b16 %v918
        %v1130 = vunpack.c.h.b16 %v918
        %v1131 = vunpack.c.l.b16 %v919
        %v1132 = vunpack.c.h.b16 %v919
        %v1133 = vunpack.c.l.b16 %v920
        %v1134 = vunpack.c.h.b16 %v920
        %v1135 = vunpack.c.l.b16 %v921
        %v1136 = vunpack.c.h.b16 %v921
        %v1137 = vunpack.c.l.b16 %v922
        %v1138 = vunpack.c.h.b16 %v922
        %v1139 = vunpack.c.l.b16 %v923
        %v1140 = vunpack.c.h.b16 %v923
        %v1141 = vunpack.c.l.b16 %v924
        %v1142 = vunpack.c.h.b16 %v924
        %v1143 = vunpack.c.l.b16 %v925
        %v1144 = vunpack.c.h.b16 %v925
        %v1145 = vunpack.c.l.b16 %v926
        %v1146 = vunpack.c.h.b16 %v926
        %v1147 = vunpack.c.l.b16 %v927
        %v1148 = vunpack.c.h.b16 %v927
        %v1149 = vunpack.c.l.b16 %v928
        %v1150 = vunpack.c.h.b16 %v928
        %v1151 = vunpack.c.l.b16 %v929
        %v1152 = vunpack.c.h.b16 %v929
        %v1153 = vunpack.c.l.b16 %v930
        %v1154 = vunpack.c.h.b16 %v930
        %v1155 = vunpack.c.l.b16 %v931
        %v1156 = vunpack.c.h.b16 %v931
        %v1157 = vunpack.c.l.b16 %v932
        %v1158 = vunpack.c.h.b16 %v932
        %v1159 = vunpack.c.l.b16 %v933
        %v1160 = vunpack.c.h.b16 %v933
        %v1161 = vunpack.c.l.b16 %v934
        %v1162 = vunpack.c.h.b16 %v934
        %v1163 = vunpack.c.l.b16 %v935
        %v1164 = vunpack.c.h.b16 %v935
        %v1165 = vunpack.c.l.b16 %v936
        %v1166 = vunpack.c.h.b16 %v936
        %v1167 = vunpack.c.l.b16 %v937
        %v1168 = vunpack.c.h.b16 %v937
        %v1169 = vunpack.c.l.b16 %v938
        %v1170 = vunpack.c.h.b16 %v938
        %v1171 = vunpack.c.l.b16 %v939
        %v1172 = vunpack.c.h.b16 %v939
        %v1173 = vunpack.c.l.b16 %v940
        %v1174 = vunpack.c.h.b16 %v940
        %v1175 = vunpack.c.l.b16 %v941
        %v1176 = vunpack.c.h.b16 %v941
        %v1177 = vunpack.c.l.b16 %v942
        %v1178 = vunpack.c.h.b16 %v942
        %v1179 = vunpack.c.l.b16 %v943
        %v1180 = vunpack.c.h.b16 %v943
        %v1181 = vunpack.c.l.b16 %v944
        %v1182 = vunpack.c.h.b16 %v944
        %v1183 = vunpack.c.l.b16 %v945
        %v1184 = vunpack.c.h.b16 %v945
        %v1185 = vunpack.c.l.b16 %v946
        %v1186 = vunpack.c.h.b16 %v946
        %v1187 = vunpack.c.l.b16 %v947
        %v1188 = vunpack.c.h.b16 %v947
        %v1189 = vunpack.c.l.b16 %v948
        %v1190 = vunpack.c.h.b16 %v948
        %v1191 = vunpack.c.l.b16 %v949
        %v1192 = vunpack.c.h.b16 %v949
        %v1193 = vunpack.c.l.b16 %v950
        %v1194 = vunpack.c.h.b16 %v950
        %v1195 = vunpack.c.l.b16 %v951
        %v1196 = vunpack.c.h.b16 %v951
        %v1197 = vunpack.c.l.b16 %v952
        %v1198 = vunpack.c.h.b16 %v952
        %v1199 = vunpack.c.l.b16 %v953
        %v1200 = vunpack.c.h.b16 %v953
        %v1201 = vunpack.c.l.b16 %v954
        %v1202 = vunpack.c.h.b16 %v954
        %v1203 = vunpack.c.l.b16 %v955
        %v1204 = vunpack.c.h.b16 %v955
        %v1205 = vunpack.c.l.b16 %v956
        %v1206 = vunpack.c.h.b16 %v956
        %v1207 = vunpack.c.l.b16 %v957
        %v1208 = vunpack.c.h.b16 %v957
        %v1209 = vunpack.c.l.b16 %v958
        %v1210 = vunpack.c.h.b16 %v958
        %v1211 = vunpack.c.l.b16 %v959
        %v1212 = vunpack.c.h.b16 %v959
        %v1213 = vunpack.c.l.b16 %v960
        %v1214 = vunpack.c.h.b16 %v960
        %v1215 = vunpack.c.l.b16 %v961
        %v1216 = vunpack.c.h.b16 %v961
        %v1217 = vunpack.c.l.b16 %v962
        %v1218 = vunpack.c.h.b16 %v962
        %v1219 = vunpack.c.l.b16 %v963
        %v1220 = vunpack.c.h.b16 %v963
        %v1221 = vunpack.c.l.b16 %v964
        %v1222 = vunpack.c.h.b16 %v964
        %v1223 = vunpack.c.l.b16 %v965
        %v1224 = vunpack.c.h.b16 %v965
        %v1225 = vunpack.c.l.b16 %v966
        %v1226 = vunpack.c.h.b16 %v966
        %v1227 = vunpack.c.l.b16 %v967
        %v1228 = vunpack.c.h.b16 %v967
        %v1229 = vunpack.c.l.b16 %v968
        %v1230 = vunpack.c.h.b16 %v968
        %v1231 = vunpack.c.l.b16 %v969
        %v1232 = vunpack.c.h.b16 %v969
        %v1233 = vunpack.c.l.b16 %v970
        %v1234 = vunpack.c.h.b16 %v970
        %v1235 = vunpack.c.l.b16 %v971
        %v1236 = vunpack.c.h.b16 %v971
        %v1237 = vunpack.c.l.b16 %v972
        %v1238 = vunpack.c.h.b16 %v972
        %v1239 = vunpack.c.l.b16 %v973
        %v1240 = vunpack.c.h.b16 %v973
        %v1241 = vunpack.c.l.b16 %v974
        %v1242 = vunpack.c.h.b16 %v974
        %v1243 = vunpack.c.l.b16 %v975
        %v1244 = vunpack.c.h.b16 %v975
        %v1245 = vunpack.c.l.b16 %v976
        %v1246 = vunpack.c.h.b16 %v976
        %v1247 = vunpack.c.l.b16 %v977
        %v1248 = vunpack.c.h.b16 %v977
        %v1249 = vunpack.c.l.b16 %v978
        %v1250 = vunpack.c.h.b16 %v978
        %v1251 = vunpack.c.l.b16 %v979
        %v1252 = vunpack.c.h.b16 %v979
        %v1253 = vunpack.c.l.b16 %v980
        %v1254 = vunpack.c.h.b16 %v980
        %v1255 = vunpack.c.l.b16 %v981
        %v1256 = vunpack.c.h.b16 %v981
        %v1257 = vunpack.c.l.b16 %v982
        %v1258 = vunpack.c.h.b16 %v982
        %v1259 = vunpack.c.l.b16 %v983
        %v1260 = vunpack.c.h.b16 %v983
        %v1261 = vunpack.c.l.b16 %v984
        %v1262 = vunpack.c.h.b16 %v984
        %v1263 = vunpack.c.l.b16 %v985
        %v1264 = vunpack.c.h.b16 %v985
        %v1265 = vunpack.c.l.b16 %v986
        %v1266 = vunpack.c.h.b16 %v986
        %v1267 = vunpack.c.l.b16 %v987
        %v1268 = vunpack.c.h.b16 %v987
        %v1269 = vunpack.c.l.b16 %v988
        %v1270 = vunpack.c.h.b16 %v988
        %v1271 = vunpack.c.l.b16 %v989
        %v1272 = vunpack.c.h.b16 %v989
        %v1273 = vunpack.c.l.b16 %v990
        %v1274 = vunpack.c.h.b16 %v990
        %v1275 = vunpack.c.l.b16 %v991
        %v1276 = vunpack.c.h.b16 %v991
        %v1277 = vunpack.c.l.b16 %v992
        %v1278 = vunpack.c.h.b16 %v992
        %v1279 = vunpack.c.l.b16 %v993
        %v1280 = vunpack.c.h.b16 %v993
        %v1281 = vunpack.c.l.b16 %v994
        %v1282 = vunpack.c.h.b16 %v994
        %v1283 = vunpack.c.l.b16 %v995
        %v1284 = vunpack.c.h.b16 %v995
        %v1285 = vunpack.c.l.b16 %v996
        %v1286 = vunpack.c.h.b16 %v996
        %v1287 = vunpack.c.l.b16 %v997
        %v1288 = vunpack.c.h.b16 %v997
        %v1289 = vunpack.c.l.b16 %v998
        %v1290 = vunpack.c.h.b16 %v998
        %v1291 = vunpack.c.l.b16 %v999
        %v1292 = vunpack.c.h.b16 %v999
        %v1293 = vunpack.c.l.b16 %v1000
        %v1294 = vunpack.c.h.b16 %v1000
        %v1295 = vunpack.c.l.b16 %v1001
        %v1296 = vunpack.c.h.b16 %v1001
        %v1297 = vunpack.c.l.b16 %v1002
        %v1298 = vunpack.c.h.b16 %v1002
        %v1299 = vunpack.c.l.b16 %v1003
        %v1300 = vunpack.c.h.b16 %v1003
        %v1301 = vunpack.c.l.b16 %v1004
        %v1302 = vunpack.c.h.b16 %v1004
        %v1303 = vunpack.c.l.b16 %v1005
        %v1304 = vunpack.c.h.b16 %v1005
        %v1305 = vunpack.c.l.b16 %v1006
        %v1306 = vunpack.c.h.b16 %v1006
        %v1307 = vunpack.c.l.b16 %v1007
        %v1308 = vunpack.c.h.b16 %v1007
        %v1309 = vunpack.c.l.b16 %v1008
        %v1310 = vunpack.c.h.b16 %v1008
        %v1311 = vpack.c.b16 %v1125, %v1119
        %v1312 = vpack.c.b16 %v1126, %v1120
        %v1313 = vpack.c.b16 %v1127, %v1121
        %v1314 = vpack.c.b16 %v1128, %v1122
        %v1315 = vpack.c.b16 %v1129, %v1123
        %v1316 = vpack.c.b16 %v1130, %v1124
        %v1317 = vpack.c.b16 %v1137, %v1131
        %v1318 = vpack.c.b16 %v1138, %v1132
        %v1319 = vpack.c.b16 %v1139, %v1133
        %v1320 = vpack.c.b16 %v1140, %v1134
        %v1321 = vpack.c.b16 %v1141, %v1135
        %v1322 = vpack.c.b16 %v1142, %v1136
        %v1323 = vpack.c.b16 %v1149, %v1143
        %v1324 = vpack.c.b16 %v1150, %v1144
        %v1325 = vpack.c.b16 %v1151, %v1145
        %v1326 = vpack.c.b16 %v1152, %v1146
        %v1327 = vpack.c.b16 %v1153, %v1147
        %v1328 = vpack.c.b16 %v1154, %v1148
        %v1329 = vpack.c.b16 %v1161, %v1155
        %v1330 = vpack.c.b16 %v1162, %v1156
        %v1331 = vpack.c.b16 %v1163, %v1157
        %v1332 = vpack.c.b16 %v1164, %v1158
        %v1333 = vpack.c.b16 %v1165, %v1159
        %v1334 = vpack.c.b16 %v1166, %v1160
        %v1335 = vpack.c.b16 %v1173, %v1167
        %v1336 = vpack.c.b16 %v1174, %v1168
        %v1337 = vpack.c.b16 %v1175, %v1169
        %v1338 = vpack.c.b16 %v1176, %v1170
        %v1339 = vpack.c.b16 %v1177, %v1171
        %v1340 = vpack.c.b16 %v1178, %v1172
        %v1341 = vpack.c.b16 %v1185, %v1179
        %v1342 = vpack.c.b16 %v1186, %v1180
        %v1343 = vpack.c.b16 %v1187, %v1181
        %v1344 = vpack.c.b16 %v1188, %v1182
        %v1345 = vpack.c.b16 %v1189, %v1183
        %v1346 = vpack.c.b16 %v1190, %v1184
        %v1347 = vpack.c.b16 %v1197, %v1191
        %v1348 = vpack.c.b16 %v1198, %v1192
        %v1349 = vpack.c.b16 %v1199, %v1193
        %v1350 = vpack.c.b16 %v1200, %v1194
        %v1351 = vpack.c.b16 %v1201, %v1195
        %v1352 = vpack.c.b16 %v1202, %v1196
        %v1353 = vpack.c.b16 %v1209, %v1203
        %v1354 = vpack.c.b16 %v1210, %v1204
        %v1355 = vpack.c.b16 %v1211, %v1205
        %v1356 = vpack.c.b16 %v1212, %v1206
        %v1357 = vpack.c.b16 %v1213, %v1207
        %v1358 = vpack.c.b16 %v1214, %v1208
        %v1359 = vpack.c.b16 %v1221, %v1215
        %v1360 = vpack.c.b16 %v1222, %v1216
        %v1361 = vpack.c.b16 %v1223, %v1217
        %v1362 = vpack.c.b16 %v1224, %v1218
        %v1363 = vpack.c.b16 %v1225, %v1219
        %v1364 = vpack.c.b16 %v1226, %v1220
        %v1365 = vpack.c.b16 %v1233, %v1227
        %v1366 = vpack.c.b16 %v1234, %v1228
        %v1367 = vpack.c.b16 %v1235, %v1229
        %v1368 = vpack.c.b16 %v1236, %v1230
        %v1369 = vpack.c.b16 %v1237, %v1231
        %v1370 = vpack.c.b16 %v1238, %v1232
        %v1371 = vpack.c.b16 %v1245, %v1239
        %v1372 = vpack.c.b16 %v1246, %v1240
        %v1373 = vpack.c.b16 %v1247, %v1241
        %v1374 = vpack.c.b16 %v1248, %v1242
        %v1375 = vpack.c.b16 %v1249, %v1243
        %v1376 = vpack.c.b16 %v1250, %v1244
        %v1377 = vpack.c.b16 %v1257, %v1251
        %v1378 = vpack.c.b16 %v1258, %v1252
        %v1379 = vpack.c.b16 %v1259, %v1253
        %v1380 = vpack.c.b16 %v1260, %v1254
        %v1381 = vpack.c.b16 %v1261, %v1255
        %v1382 = vpack.c.b16 %v1262, %v1256
        %v1383 = vpack.c.b16 %v1269, %v1263
        %v1384 = vpack.c.b16 %v1270, %v1264
        %v1385 = vpack.c.b16 %v1271, %v1265
        %v1386 = vpack.c.b16 %v1272, %v1266
        %v1387 = vpack.c.b16 %v1273, %v1267
        %v1388 = vpack.c.b16 %v1274, %v1268
        %v1389 = vpack.c.b16 %v1281, %v1275
        %v1390 = vpack.c.b16 %v1282, %v1276
        %v1391 = vpack.c.b16 %v1283, %v1277
        %v1392 = vpack.c.b16 %v1284, %v1278
        %v1393 = vpack.c.b16 %v1285, %v1279
        %v1394 = vpack.c.b16 %v1286, %v1280
        %v1395 = vpack.c.b16 %v1293, %v1287
        %v1396 = vpack.c.b16 %v1294, %v1288
        %v1397 = vpack.c.b16 %v1295, %v1289
        %v1398 = vpack.c.b16 %v1296, %v1290
        %v1399 = vpack.c.b16 %v1297, %v1291
        %v1400 = vpack.c.b16 %v1298, %v1292
        %v1401 = vpack.c.b16 %v1305, %v1299
        %v1402 = vpack.c.b16 %v1306, %v1300
        %v1403 = vpack.c.b16 %v1307, %v1301
        %v1404 = vpack.c.b16 %v1308, %v1302
        %v1405 = vpack.c.b16 %v1309, %v1303
        %v1406 = vpack.c.b16 %v1310, %v1304
        %1503 = vmatpush.bf16.msra.mxu0 %v1353
        %1504 = vmatpush.bf16.msra.mxu0 %v1347
        %1505 = vmatpush.bf16.msra.mxu0 %v1341
        %1506 = vmatpush.bf16.msra.mxu0 %v1335
        %1507 = vmatpush.bf16.msra.mxu0 %v1329
        %1508 = vmatpush.bf16.msra.mxu0 %v1323
        %1509 = vmatpush.bf16.msra.mxu0 %v1317
        %1510 = vmatpush.bf16.msra.mxu0 %v1311
        %1511 = vmatmul.bf16.gmra.mxu0 %v897
        %v1512 = vpop.f32.mrf.mxu0
        %v1513 = vadd.f32 %v1011, %v1512
        %v1514 = vpop.f32.mrf.mxu0
        %v1515 = vadd.f32 %v1011, %v1514
        %1516 = vmatmul.bf16.gmra.mxu0 %v899
        %v1517 = vpop.f32.mrf.mxu0
        %v1518 = vadd.f32 %v1011, %v1517
        %v1519 = vpop.f32.mrf.mxu0
        %v1520 = vadd.f32 %v1011, %v1519
        %1521 = vmatmul.bf16.gmra.mxu0 %v901
        %v1522 = vpop.f32.mrf.mxu0
        %v1523 = vadd.f32 %v1011, %v1522
        %v1524 = vpop.f32.mrf.mxu0
        %v1525 = vadd.f32 %v1011, %v1524
        %1526 = vmatmul.bf16.gmra.mxu0 %v903
        %v1527 = vpop.f32.mrf.mxu0
        %v1528 = vadd.f32 %v1011, %v1527
        %v1529 = vpop.f32.mrf.mxu0
        %v1530 = vadd.f32 %v1011, %v1529
        %1531 = vmatmul.bf16.gmra.mxu0 %v905
        %v1532 = vpop.f32.mrf.mxu0
        %v1533 = vadd.f32 %v1011, %v1532
        %v1534 = vpop.f32.mrf.mxu0
        %v1535 = vadd.f32 %v1011, %v1534
        %1536 = vmatmul.bf16.gmra.mxu0 %v907
        %v1537 = vpop.f32.mrf.mxu0
        %v1538 = vadd.f32 %v1011, %v1537
        %v1539 = vpop.f32.mrf.mxu0
        %v1540 = vadd.f32 %v1011, %v1539
        %1541 = vmatmul.bf16.gmra.mxu0 %v909
        %v1542 = vpop.f32.mrf.mxu0
        %v1543 = vadd.f32 %v1011, %v1542
        %v1544 = vpop.f32.mrf.mxu0
        %v1545 = vadd.f32 %v1011, %v1544
        %1546 = vmatmul.bf16.gmra.mxu0 %v911
        %v1547 = vpop.f32.mrf.mxu0
        %v1548 = vadd.f32 %v1011, %v1547
        %v1549 = vpop.f32.mrf.mxu0
        %v1550 = vadd.f32 %v1011, %v1549
        %1551 = vdwg.mxu0
        %1552 = vmatpush.bf16.msra.mxu0 %v1401
        %1553 = vmatpush.bf16.msra.mxu0 %v1395
        %1554 = vmatpush.bf16.msra.mxu0 %v1389
        %1555 = vmatpush.bf16.msra.mxu0 %v1383
        %1556 = vmatpush.bf16.msra.mxu0 %v1377
        %1557 = vmatpush.bf16.msra.mxu0 %v1371
        %1558 = vmatpush.bf16.msra.mxu0 %v1365
        %1559 = vmatpush.bf16.msra.mxu0 %v1359
        %1560 = vmatmul.bf16.gmra.mxu0 %v898
        %v1561 = vpop.f32.mrf.mxu0
        %v1562 = vadd.f32 %v1513, %v1561
        %v1563 = vpop.f32.mrf.mxu0
        %v1564 = vadd.f32 %v1515, %v1563
        %1565 = vmatmul.bf16.gmra.mxu0 %v900
        %v1566 = vpop.f32.mrf.mxu0
        %v1567 = vadd.f32 %v1518, %v1566
        %v1568 = vpop.f32.mrf.mxu0
        %v1569 = vadd.f32 %v1520, %v1568
        %1570 = vmatmul.bf16.gmra.mxu0 %v902
        %v1571 = vpop.f32.mrf.mxu0
        %v1572 = vadd.f32 %v1523, %v1571
        %v1573 = vpop.f32.mrf.mxu0
        %v1574 = vadd.f32 %v1525, %v1573
        %1575 = vmatmul.bf16.gmra.mxu0 %v904
        %v1576 = vpop.f32.mrf.mxu0
        %v1577 = vadd.f32 %v1528, %v1576
        %v1578 = vpop.f32.mrf.mxu0
        %v1579 = vadd.f32 %v1530, %v1578
        %1580 = vmatmul.bf16.gmra.mxu0 %v906
        %v1581 = vpop.f32.mrf.mxu0
        %v1582 = vadd.f32 %v1533, %v1581
        %v1583 = vpop.f32.mrf.mxu0
        %v1584 = vadd.f32 %v1535, %v1583
        %1585 = vmatmul.bf16.gmra.mxu0 %v908
        %v1586 = vpop.f32.mrf.mxu0
        %v1587 = vadd.f32 %v1538, %v1586
        %v1588 = vpop.f32.mrf.mxu0
        %v1589 = vadd.f32 %v1540, %v1588
        %1590 = vmatmul.bf16.gmra.mxu0 %v910
        %v1591 = vpop.f32.mrf.mxu0
        %v1592 = vadd.f32 %v1543, %v1591
        %v1593 = vpop.f32.mrf.mxu0
        %v1594 = vadd.f32 %v1545, %v1593
        %1595 = vmatmul.bf16.gmra.mxu0 %v912
        %v1596 = vpop.f32.mrf.mxu0
        %v1597 = vadd.f32 %v1548, %v1596
        %v1598 = vpop.f32.mrf.mxu0
        %v1599 = vadd.f32 %v1550, %v1598
        %1600 = vdwg.mxu0
        %1601 = vmatpush.bf16.msra.mxu0 %v1354
        %1602 = vmatpush.bf16.msra.mxu0 %v1348
        %1603 = vmatpush.bf16.msra.mxu0 %v1342
        %1604 = vmatpush.bf16.msra.mxu0 %v1336
        %1605 = vmatpush.bf16.msra.mxu0 %v1330
        %1606 = vmatpush.bf16.msra.mxu0 %v1324
        %1607 = vmatpush.bf16.msra.mxu0 %v1318
        %1608 = vmatpush.bf16.msra.mxu0 %v1312
        %1609 = vmatmul.bf16.gmra.mxu0 %v897
        %v1610 = vpop.f32.mrf.mxu0
        %v1611 = vadd.f32 %v1012, %v1610
        %v1612 = vpop.f32.mrf.mxu0
        %v1613 = vadd.f32 %v1012, %v1612
        %1614 = vmatmul.bf16.gmra.mxu0 %v899
        %v1615 = vpop.f32.mrf.mxu0
        %v1616 = vadd.f32 %v1012, %v1615
        %v1617 = vpop.f32.mrf.mxu0
        %v1618 = vadd.f32 %v1012, %v1617
        %1619 = vmatmul.bf16.gmra.mxu0 %v901
        %v1620 = vpop.f32.mrf.mxu0
        %v1621 = vadd.f32 %v1012, %v1620
        %v1622 = vpop.f32.mrf.mxu0
        %v1623 = vadd.f32 %v1012, %v1622
        %1624 = vmatmul.bf16.gmra.mxu0 %v903
        %v1625 = vpop.f32.mrf.mxu0
        %v1626 = vadd.f32 %v1012, %v1625
        %v1627 = vpop.f32.mrf.mxu0
        %v1628 = vadd.f32 %v1012, %v1627
        %1629 = vmatmul.bf16.gmra.mxu0 %v905
        %v1630 = vpop.f32.mrf.mxu0
        %v1631 = vadd.f32 %v1012, %v1630
        %v1632 = vpop.f32.mrf.mxu0
        %v1633 = vadd.f32 %v1012, %v1632
        %1634 = vmatmul.bf16.gmra.mxu0 %v907
        %v1635 = vpop.f32.mrf.mxu0
        %v1636 = vadd.f32 %v1012, %v1635
        %v1637 = vpop.f32.mrf.mxu0
        %v1638 = vadd.f32 %v1012, %v1637
        %1639 = vmatmul.bf16.gmra.mxu0 %v909
        %v1640 = vpop.f32.mrf.mxu0
        %v1641 = vadd.f32 %v1012, %v1640
        %v1642 = vpop.f32.mrf.mxu0
        %v1643 = vadd.f32 %v1012, %v1642
        %1644 = vmatmul.bf16.gmra.mxu0 %v911
        %v1645 = vpop.f32.mrf.mxu0
        %v1646 = vadd.f32 %v1012, %v1645
        %v1647 = vpop.f32.mrf.mxu0
        %v1648 = vadd.f32 %v1012, %v1647
        %1649 = vdwg.mxu0
        %1650 = vmatpush.bf16.msra.mxu0 %v1402
        %1651 = vmatpush.bf16.msra.mxu0 %v1396
        %1652 = vmatpush.bf16.msra.mxu0 %v1390
        %1653 = vmatpush.bf16.msra.mxu0 %v1384
        %1654 = vmatpush.bf16.msra.mxu0 %v1378
        %1655 = vmatpush.bf16.msra.mxu0 %v1372
        %1656 = vmatpush.bf16.msra.mxu0 %v1366
        %1657 = vmatpush.bf16.msra.mxu0 %v1360
        %1658 = vmatmul.bf16.gmra.mxu0 %v898
        %v1659 = vpop.f32.mrf.mxu0
        %v1660 = vadd.f32 %v1611, %v1659
        %v1661 = vpop.f32.mrf.mxu0
        %v1662 = vadd.f32 %v1613, %v1661
        %1663 = vmatmul.bf16.gmra.mxu0 %v900
        %v1664 = vpop.f32.mrf.mxu0
        %v1665 = vadd.f32 %v1616, %v1664
        %v1666 = vpop.f32.mrf.mxu0
        %v1667 = vadd.f32 %v1618, %v1666
        %1668 = vmatmul.bf16.gmra.mxu0 %v902
        %v1669 = vpop.f32.mrf.mxu0
        %v1670 = vadd.f32 %v1621, %v1669
        %v1671 = vpop.f32.mrf.mxu0
        %v1672 = vadd.f32 %v1623, %v1671
        %1673 = vmatmul.bf16.gmra.mxu0 %v904
        %v1674 = vpop.f32.mrf.mxu0
        %v1675 = vadd.f32 %v1626, %v1674
        %v1676 = vpop.f32.mrf.mxu0
        %v1677 = vadd.f32 %v1628, %v1676
        %1678 = vmatmul.bf16.gmra.mxu0 %v906
        %v1679 = vpop.f32.mrf.mxu0
        %v1680 = vadd.f32 %v1631, %v1679
        %v1681 = vpop.f32.mrf.mxu0
        %v1682 = vadd.f32 %v1633, %v1681
        %1683 = vmatmul.bf16.gmra.mxu0 %v908
        %v1684 = vpop.f32.mrf.mxu0
        %v1685 = vadd.f32 %v1636, %v1684
        %v1686 = vpop.f32.mrf.mxu0
        %v1687 = vadd.f32 %v1638, %v1686
        %1688 = vmatmul.bf16.gmra.mxu0 %v910
        %v1689 = vpop.f32.mrf.mxu0
        %v1690 = vadd.f32 %v1641, %v1689
        %v1691 = vpop.f32.mrf.mxu0
        %v1692 = vadd.f32 %v1643, %v1691
        %1693 = vmatmul.bf16.gmra.mxu0 %v912
        %v1694 = vpop.f32.mrf.mxu0
        %v1695 = vadd.f32 %v1646, %v1694
        %v1696 = vpop.f32.mrf.mxu0
        %v1697 = vadd.f32 %v1648, %v1696
        %1698 = vdwg.mxu0
        %1699 = vmatpush.bf16.msra.mxu0 %v1355
        %1700 = vmatpush.bf16.msra.mxu0 %v1349
        %1701 = vmatpush.bf16.msra.mxu0 %v1343
        %1702 = vmatpush.bf16.msra.mxu0 %v1337
        %1703 = vmatpush.bf16.msra.mxu0 %v1331
        %1704 = vmatpush.bf16.msra.mxu0 %v1325
        %1705 = vmatpush.bf16.msra.mxu0 %v1319
        %1706 = vmatpush.bf16.msra.mxu0 %v1313
        %1707 = vmatmul.bf16.gmra.mxu0 %v897
        %v1708 = vpop.f32.mrf.mxu0
        %v1709 = vadd.f32 %v1013, %v1708
        %v1710 = vpop.f32.mrf.mxu0
        %v1711 = vadd.f32 %v1013, %v1710
        %1712 = vmatmul.bf16.gmra.mxu0 %v899
        %v1713 = vpop.f32.mrf.mxu0
        %v1714 = vadd.f32 %v1013, %v1713
        %v1715 = vpop.f32.mrf.mxu0
        %v1716 = vadd.f32 %v1013, %v1715
        %1717 = vmatmul.bf16.gmra.mxu0 %v901
        %v1718 = vpop.f32.mrf.mxu0
        %v1719 = vadd.f32 %v1013, %v1718
        %v1720 = vpop.f32.mrf.mxu0
        %v1721 = vadd.f32 %v1013, %v1720
        %1722 = vmatmul.bf16.gmra.mxu0 %v903
        %v1723 = vpop.f32.mrf.mxu0
        %v1724 = vadd.f32 %v1013, %v1723
        %v1725 = vpop.f32.mrf.mxu0
        %v1726 = vadd.f32 %v1013, %v1725
        %1727 = vmatmul.bf16.gmra.mxu0 %v905
        %v1728 = vpop.f32.mrf.mxu0
        %v1729 = vadd.f32 %v1013, %v1728
        %v1730 = vpop.f32.mrf.mxu0
        %v1731 = vadd.f32 %v1013, %v1730
        %1732 = vmatmul.bf16.gmra.mxu0 %v907
        %v1733 = vpop.f32.mrf.mxu0
        %v1734 = vadd.f32 %v1013, %v1733
        %v1735 = vpop.f32.mrf.mxu0
        %v1736 = vadd.f32 %v1013, %v1735
        %1737 = vmatmul.bf16.gmra.mxu0 %v909
        %v1738 = vpop.f32.mrf.mxu0
        %v1739 = vadd.f32 %v1013, %v1738
        %v1740 = vpop.f32.mrf.mxu0
        %v1741 = vadd.f32 %v1013, %v1740
        %1742 = vmatmul.bf16.gmra.mxu0 %v911
        %v1743 = vpop.f32.mrf.mxu0
        %v1744 = vadd.f32 %v1013, %v1743
        %v1745 = vpop.f32.mrf.mxu0
        %v1746 = vadd.f32 %v1013, %v1745
        %1747 = vdwg.mxu0
        %1748 = vmatpush.bf16.msra.mxu0 %v1403
        %1749 = vmatpush.bf16.msra.mxu0 %v1397
        %1750 = vmatpush.bf16.msra.mxu0 %v1391
        %1751 = vmatpush.bf16.msra.mxu0 %v1385
        %1752 = vmatpush.bf16.msra.mxu0 %v1379
        %1753 = vmatpush.bf16.msra.mxu0 %v1373
        %1754 = vmatpush.bf16.msra.mxu0 %v1367
        %1755 = vmatpush.bf16.msra.mxu0 %v1361
        %1756 = vmatmul.bf16.gmra.mxu0 %v898
        %v1757 = vpop.f32.mrf.mxu0
        %v1758 = vadd.f32 %v1709, %v1757
        %v1759 = vpop.f32.mrf.mxu0
        %v1760 = vadd.f32 %v1711, %v1759
        %1761 = vmatmul.bf16.gmra.mxu0 %v900
        %v1762 = vpop.f32.mrf.mxu0
        %v1763 = vadd.f32 %v1714, %v1762
        %v1764 = vpop.f32.mrf.mxu0
        %v1765 = vadd.f32 %v1716, %v1764
        %1766 = vmatmul.bf16.gmra.mxu0 %v902
        %v1767 = vpop.f32.mrf.mxu0
        %v1768 = vadd.f32 %v1719, %v1767
        %v1769 = vpop.f32.mrf.mxu0
        %v1770 = vadd.f32 %v1721, %v1769
        %1771 = vmatmul.bf16.gmra.mxu0 %v904
        %v1772 = vpop.f32.mrf.mxu0
        %v1773 = vadd.f32 %v1724, %v1772
        %v1774 = vpop.f32.mrf.mxu0
        %v1775 = vadd.f32 %v1726, %v1774
        %1776 = vmatmul.bf16.gmra.mxu0 %v906
        %v1777 = vpop.f32.mrf.mxu0
        %v1778 = vadd.f32 %v1729, %v1777
        %v1779 = vpop.f32.mrf.mxu0
        %v1780 = vadd.f32 %v1731, %v1779
        %1781 = vmatmul.bf16.gmra.mxu0 %v908
        %v1782 = vpop.f32.mrf.mxu0
        %v1783 = vadd.f32 %v1734, %v1782
        %v1784 = vpop.f32.mrf.mxu0
        %v1785 = vadd.f32 %v1736, %v1784
        %1786 = vmatmul.bf16.gmra.mxu0 %v910
        %v1787 = vpop.f32.mrf.mxu0
        %v1788 = vadd.f32 %v1739, %v1787
        %v1789 = vpop.f32.mrf.mxu0
        %v1790 = vadd.f32 %v1741, %v1789
        %1791 = vmatmul.bf16.gmra.mxu0 %v912
        %v1792 = vpop.f32.mrf.mxu0
        %v1793 = vadd.f32 %v1744, %v1792
        %v1794 = vpop.f32.mrf.mxu0
        %v1795 = vadd.f32 %v1746, %v1794
        %1796 = vdwg.mxu0
        %1797 = vmatpush.bf16.msra.mxu0 %v1356
        %1798 = vmatpush.bf16.msra.mxu0 %v1350
        %1799 = vmatpush.bf16.msra.mxu0 %v1344
        %1800 = vmatpush.bf16.msra.mxu0 %v1338
        %1801 = vmatpush.bf16.msra.mxu0 %v1332
        %1802 = vmatpush.bf16.msra.mxu0 %v1326
        %1803 = vmatpush.bf16.msra.mxu0 %v1320
        %1804 = vmatpush.bf16.msra.mxu0 %v1314
        %1805 = vmatmul.bf16.gmra.mxu0 %v897
        %v1806 = vpop.f32.mrf.mxu0
        %v1807 = vadd.f32 %v1014, %v1806
        %v1808 = vpop.f32.mrf.mxu0
        %v1809 = vadd.f32 %v1014, %v1808
        %1810 = vmatmul.bf16.gmra.mxu0 %v899
        %v1811 = vpop.f32.mrf.mxu0
        %v1812 = vadd.f32 %v1014, %v1811
        %v1813 = vpop.f32.mrf.mxu0
        %v1814 = vadd.f32 %v1014, %v1813
        %1815 = vmatmul.bf16.gmra.mxu0 %v901
        %v1816 = vpop.f32.mrf.mxu0
        %v1817 = vadd.f32 %v1014, %v1816
        %v1818 = vpop.f32.mrf.mxu0
        %v1819 = vadd.f32 %v1014, %v1818
        %1820 = vmatmul.bf16.gmra.mxu0 %v903
        %v1821 = vpop.f32.mrf.mxu0
        %v1822 = vadd.f32 %v1014, %v1821
        %v1823 = vpop.f32.mrf.mxu0
        %v1824 = vadd.f32 %v1014, %v1823
        %1825 = vmatmul.bf16.gmra.mxu0 %v905
        %v1826 = vpop.f32.mrf.mxu0
        %v1827 = vadd.f32 %v1014, %v1826
        %v1828 = vpop.f32.mrf.mxu0
        %v1829 = vadd.f32 %v1014, %v1828
        %1830 = vmatmul.bf16.gmra.mxu0 %v907
        %v1831 = vpop.f32.mrf.mxu0
        %v1832 = vadd.f32 %v1014, %v1831
        %v1833 = vpop.f32.mrf.mxu0
        %v1834 = vadd.f32 %v1014, %v1833
        %1835 = vmatmul.bf16.gmra.mxu0 %v909
        %v1836 = vpop.f32.mrf.mxu0
        %v1837 = vadd.f32 %v1014, %v1836
        %v1838 = vpop.f32.mrf.mxu0
        %v1839 = vadd.f32 %v1014, %v1838
        %1840 = vmatmul.bf16.gmra.mxu0 %v911
        %v1841 = vpop.f32.mrf.mxu0
        %v1842 = vadd.f32 %v1014, %v1841
        %v1843 = vpop.f32.mrf.mxu0
        %v1844 = vadd.f32 %v1014, %v1843
        %1845 = vdwg.mxu0
        %1846 = vmatpush.bf16.msra.mxu0 %v1404
        %1847 = vmatpush.bf16.msra.mxu0 %v1398
        %1848 = vmatpush.bf16.msra.mxu0 %v1392
        %1849 = vmatpush.bf16.msra.mxu0 %v1386
        %1850 = vmatpush.bf16.msra.mxu0 %v1380
        %1851 = vmatpush.bf16.msra.mxu0 %v1374
        %1852 = vmatpush.bf16.msra.mxu0 %v1368
        %1853 = vmatpush.bf16.msra.mxu0 %v1362
        %1854 = vmatmul.bf16.gmra.mxu0 %v898
        %v1855 = vpop.f32.mrf.mxu0
        %v1856 = vadd.f32 %v1807, %v1855
        %v1857 = vpop.f32.mrf.mxu0
        %v1858 = vadd.f32 %v1809, %v1857
        %1859 = vmatmul.bf16.gmra.mxu0 %v900
        %v1860 = vpop.f32.mrf.mxu0
        %v1861 = vadd.f32 %v1812, %v1860
        %v1862 = vpop.f32.mrf.mxu0
        %v1863 = vadd.f32 %v1814, %v1862
        %1864 = vmatmul.bf16.gmra.mxu0 %v902
        %v1865 = vpop.f32.mrf.mxu0
        %v1866 = vadd.f32 %v1817, %v1865
        %v1867 = vpop.f32.mrf.mxu0
        %v1868 = vadd.f32 %v1819, %v1867
        %1869 = vmatmul.bf16.gmra.mxu0 %v904
        %v1870 = vpop.f32.mrf.mxu0
        %v1871 = vadd.f32 %v1822, %v1870
        %v1872 = vpop.f32.mrf.mxu0
        %v1873 = vadd.f32 %v1824, %v1872
        %1874 = vmatmul.bf16.gmra.mxu0 %v906
        %v1875 = vpop.f32.mrf.mxu0
        %v1876 = vadd.f32 %v1827, %v1875
        %v1877 = vpop.f32.mrf.mxu0
        %v1878 = vadd.f32 %v1829, %v1877
        %1879 = vmatmul.bf16.gmra.mxu0 %v908
        %v1880 = vpop.f32.mrf.mxu0
        %v1881 = vadd.f32 %v1832, %v1880
        %v1882 = vpop.f32.mrf.mxu0
        %v1883 = vadd.f32 %v1834, %v1882
        %1884 = vmatmul.bf16.gmra.mxu0 %v910
        %v1885 = vpop.f32.mrf.mxu0
        %v1886 = vadd.f32 %v1837, %v1885
        %v1887 = vpop.f32.mrf.mxu0
        %v1888 = vadd.f32 %v1839, %v1887
        %1889 = vmatmul.bf16.gmra.mxu0 %v912
        %v1890 = vpop.f32.mrf.mxu0
        %v1891 = vadd.f32 %v1842, %v1890
        %v1892 = vpop.f32.mrf.mxu0
        %v1893 = vadd.f32 %v1844, %v1892
        %1894 = vdwg.mxu0
        %1895 = vmatpush.bf16.msra.mxu0 %v1357
        %1896 = vmatpush.bf16.msra.mxu0 %v1351
        %1897 = vmatpush.bf16.msra.mxu0 %v1345
        %1898 = vmatpush.bf16.msra.mxu0 %v1339
        %1899 = vmatpush.bf16.msra.mxu0 %v1333
        %1900 = vmatpush.bf16.msra.mxu0 %v1327
        %1901 = vmatpush.bf16.msra.mxu0 %v1321
        %1902 = vmatpush.bf16.msra.mxu0 %v1315
        %1903 = vmatmul.bf16.gmra.mxu0 %v897
        %v1904 = vpop.f32.mrf.mxu0
        %v1905 = vadd.f32 %v1015, %v1904
        %v1906 = vpop.f32.mrf.mxu0
        %v1907 = vadd.f32 %v1015, %v1906
        %1908 = vmatmul.bf16.gmra.mxu0 %v899
        %v1909 = vpop.f32.mrf.mxu0
        %v1910 = vadd.f32 %v1015, %v1909
        %v1911 = vpop.f32.mrf.mxu0
        %v1912 = vadd.f32 %v1015, %v1911
        %1913 = vmatmul.bf16.gmra.mxu0 %v901
        %v1914 = vpop.f32.mrf.mxu0
        %v1915 = vadd.f32 %v1015, %v1914
        %v1916 = vpop.f32.mrf.mxu0
        %v1917 = vadd.f32 %v1015, %v1916
        %1918 = vmatmul.bf16.gmra.mxu0 %v903
        %v1919 = vpop.f32.mrf.mxu0
        %v1920 = vadd.f32 %v1015, %v1919
        %v1921 = vpop.f32.mrf.mxu0
        %v1922 = vadd.f32 %v1015, %v1921
        %1923 = vmatmul.bf16.gmra.mxu0 %v905
        %v1924 = vpop.f32.mrf.mxu0
        %v1925 = vadd.f32 %v1015, %v1924
        %v1926 = vpop.f32.mrf.mxu0
        %v1927 = vadd.f32 %v1015, %v1926
        %1928 = vmatmul.bf16.gmra.mxu0 %v907
        %v1929 = vpop.f32.mrf.mxu0
        %v1930 = vadd.f32 %v1015, %v1929
        %v1931 = vpop.f32.mrf.mxu0
        %v1932 = vadd.f32 %v1015, %v1931
        %1933 = vmatmul.bf16.gmra.mxu0 %v909
        %v1934 = vpop.f32.mrf.mxu0
        %v1935 = vadd.f32 %v1015, %v1934
        %v1936 = vpop.f32.mrf.mxu0
        %v1937 = vadd.f32 %v1015, %v1936
        %1938 = vmatmul.bf16.gmra.mxu0 %v911
        %v1939 = vpop.f32.mrf.mxu0
        %v1940 = vadd.f32 %v1015, %v1939
        %v1941 = vpop.f32.mrf.mxu0
        %v1942 = vadd.f32 %v1015, %v1941
        %1943 = vdwg.mxu0
        %1944 = vmatpush.bf16.msra.mxu0 %v1405
        %1945 = vmatpush.bf16.msra.mxu0 %v1399
        %1946 = vmatpush.bf16.msra.mxu0 %v1393
        %1947 = vmatpush.bf16.msra.mxu0 %v1387
        %1948 = vmatpush.bf16.msra.mxu0 %v1381
        %1949 = vmatpush.bf16.msra.mxu0 %v1375
        %1950 = vmatpush.bf16.msra.mxu0 %v1369
        %1951 = vmatpush.bf16.msra.mxu0 %v1363
        %1952 = vmatmul.bf16.gmra.mxu0 %v898
        %v1953 = vpop.f32.mrf.mxu0
        %v1954 = vadd.f32 %v1905, %v1953
        %v1955 = vpop.f32.mrf.mxu0
        %v1956 = vadd.f32 %v1907, %v1955
        %1957 = vmatmul.bf16.gmra.mxu0 %v900
        %v1958 = vpop.f32.mrf.mxu0
        %v1959 = vadd.f32 %v1910, %v1958
        %v1960 = vpop.f32.mrf.mxu0
        %v1961 = vadd.f32 %v1912, %v1960
        %1962 = vmatmul.bf16.gmra.mxu0 %v902
        %v1963 = vpop.f32.mrf.mxu0
        %v1964 = vadd.f32 %v1915, %v1963
        %v1965 = vpop.f32.mrf.mxu0
        %v1966 = vadd.f32 %v1917, %v1965
        %1967 = vmatmul.bf16.gmra.mxu0 %v904
        %v1968 = vpop.f32.mrf.mxu0
        %v1969 = vadd.f32 %v1920, %v1968
        %v1970 = vpop.f32.mrf.mxu0
        %v1971 = vadd.f32 %v1922, %v1970
        %1972 = vmatmul.bf16.gmra.mxu0 %v906
        %v1973 = vpop.f32.mrf.mxu0
        %v1974 = vadd.f32 %v1925, %v1973
        %v1975 = vpop.f32.mrf.mxu0
        %v1976 = vadd.f32 %v1927, %v1975
        %1977 = vmatmul.bf16.gmra.mxu0 %v908
        %v1978 = vpop.f32.mrf.mxu0
        %v1979 = vadd.f32 %v1930, %v1978
        %v1980 = vpop.f32.mrf.mxu0
        %v1981 = vadd.f32 %v1932, %v1980
        %1982 = vmatmul.bf16.gmra.mxu0 %v910
        %v1983 = vpop.f32.mrf.mxu0
        %v1984 = vadd.f32 %v1935, %v1983
        %v1985 = vpop.f32.mrf.mxu0
        %v1986 = vadd.f32 %v1937, %v1985
        %1987 = vmatmul.bf16.gmra.mxu0 %v912
        %v1988 = vpop.f32.mrf.mxu0
        %v1989 = vadd.f32 %v1940, %v1988
        %v1990 = vpop.f32.mrf.mxu0
        %v1991 = vadd.f32 %v1942, %v1990
        %1992 = vdwg.mxu0
        %1993 = vmatpush.bf16.msra.mxu0 %v1358
        %1994 = vmatpush.bf16.msra.mxu0 %v1352
        %1995 = vmatpush.bf16.msra.mxu0 %v1346
        %1996 = vmatpush.bf16.msra.mxu0 %v1340
        %1997 = vmatpush.bf16.msra.mxu0 %v1334
        %1998 = vmatpush.bf16.msra.mxu0 %v1328
        %1999 = vmatpush.bf16.msra.mxu0 %v1322
        %2000 = vmatpush.bf16.msra.mxu0 %v1316
        %2001 = vmatmul.bf16.gmra.mxu0 %v897
        %v2002 = vpop.f32.mrf.mxu0
        %v2003 = vadd.f32 %v1016, %v2002
        %v2004 = vpop.f32.mrf.mxu0
        %v2005 = vadd.f32 %v1016, %v2004
        %2006 = vmatmul.bf16.gmra.mxu0 %v899
        %v2007 = vpop.f32.mrf.mxu0
        %v2008 = vadd.f32 %v1016, %v2007
        %v2009 = vpop.f32.mrf.mxu0
        %v2010 = vadd.f32 %v1016, %v2009
        %2011 = vmatmul.bf16.gmra.mxu0 %v901
        %v2012 = vpop.f32.mrf.mxu0
        %v2013 = vadd.f32 %v1016, %v2012
        %v2014 = vpop.f32.mrf.mxu0
        %v2015 = vadd.f32 %v1016, %v2014
        %2016 = vmatmul.bf16.gmra.mxu0 %v903
        %v2017 = vpop.f32.mrf.mxu0
        %v2018 = vadd.f32 %v1016, %v2017
        %v2019 = vpop.f32.mrf.mxu0
        %v2020 = vadd.f32 %v1016, %v2019
        %2021 = vmatmul.bf16.gmra.mxu0 %v905
        %v2022 = vpop.f32.mrf.mxu0
        %v2023 = vadd.f32 %v1016, %v2022
        %v2024 = vpop.f32.mrf.mxu0
        %v2025 = vadd.f32 %v1016, %v2024
        %2026 = vmatmul.bf16.gmra.mxu0 %v907
        %v2027 = vpop.f32.mrf.mxu0
        %v2028 = vadd.f32 %v1016, %v2027
        %v2029 = vpop.f32.mrf.mxu0
        %v2030 = vadd.f32 %v1016, %v2029
        %2031 = vmatmul.bf16.gmra.mxu0 %v909
        %v2032 = vpop.f32.mrf.mxu0
        %v2033 = vadd.f32 %v1016, %v2032
        %v2034 = vpop.f32.mrf.mxu0
        %v2035 = vadd.f32 %v1016, %v2034
        %2036 = vmatmul.bf16.gmra.mxu0 %v911
        %v2037 = vpop.f32.mrf.mxu0
        %v2038 = vadd.f32 %v1016, %v2037
        %v2039 = vpop.f32.mrf.mxu0
        %v2040 = vadd.f32 %v1016, %v2039
        %2041 = vdwg.mxu0
        %2042 = vmatpush.bf16.msra.mxu0 %v1406
        %2043 = vmatpush.bf16.msra.mxu0 %v1400
        %2044 = vmatpush.bf16.msra.mxu0 %v1394
        %2045 = vmatpush.bf16.msra.mxu0 %v1388
        %2046 = vmatpush.bf16.msra.mxu0 %v1382
        %2047 = vmatpush.bf16.msra.mxu0 %v1376
        %2048 = vmatpush.bf16.msra.mxu0 %v1370
        %2049 = vmatpush.bf16.msra.mxu0 %v1364
        %2050 = vmatmul.bf16.gmra.mxu0 %v898
        %v2051 = vpop.f32.mrf.mxu0
        %v2052 = vadd.f32 %v2003, %v2051
        %v2053 = vpop.f32.mrf.mxu0
        %v2054 = vadd.f32 %v2005, %v2053
        %2055 = vmatmul.bf16.gmra.mxu0 %v900
        %v2056 = vpop.f32.mrf.mxu0
        %v2057 = vadd.f32 %v2008, %v2056
        %v2058 = vpop.f32.mrf.mxu0
        %v2059 = vadd.f32 %v2010, %v2058
        %2060 = vmatmul.bf16.gmra.mxu0 %v902
        %v2061 = vpop.f32.mrf.mxu0
        %v2062 = vadd.f32 %v2013, %v2061
        %v2063 = vpop.f32.mrf.mxu0
        %v2064 = vadd.f32 %v2015, %v2063
        %2065 = vmatmul.bf16.gmra.mxu0 %v904
        %v2066 = vpop.f32.mrf.mxu0
        %v2067 = vadd.f32 %v2018, %v2066
        %v2068 = vpop.f32.mrf.mxu0
        %v2069 = vadd.f32 %v2020, %v2068
        %2070 = vmatmul.bf16.gmra.mxu0 %v906
        %v2071 = vpop.f32.mrf.mxu0
        %v2072 = vadd.f32 %v2023, %v2071
        %v2073 = vpop.f32.mrf.mxu0
        %v2074 = vadd.f32 %v2025, %v2073
        %2075 = vmatmul.bf16.gmra.mxu0 %v908
        %v2076 = vpop.f32.mrf.mxu0
        %v2077 = vadd.f32 %v2028, %v2076
        %v2078 = vpop.f32.mrf.mxu0
        %v2079 = vadd.f32 %v2030, %v2078
        %2080 = vmatmul.bf16.gmra.mxu0 %v910
        %v2081 = vpop.f32.mrf.mxu0
        %v2082 = vadd.f32 %v2033, %v2081
        %v2083 = vpop.f32.mrf.mxu0
        %v2084 = vadd.f32 %v2035, %v2083
        %2085 = vmatmul.bf16.gmra.mxu0 %v912
        %v2086 = vpop.f32.mrf.mxu0
        %v2087 = vadd.f32 %v2038, %v2086
        %v2088 = vpop.f32.mrf.mxu0
        %v2089 = vadd.f32 %v2040, %v2088
        %2090 = vdwg.mxu0
        %v2091 = vpack.c.bf16 %v1660, %v1562
        %v2092 = vpack.c.bf16 %v1662, %v1564
        %v2093 = vpack.c.bf16 %v1665, %v1567
        %v2094 = vpack.c.bf16 %v1667, %v1569
        %v2095 = vpack.c.bf16 %v1670, %v1572
        %v2096 = vpack.c.bf16 %v1672, %v1574
        %v2097 = vpack.c.bf16 %v1675, %v1577
        %v2098 = vpack.c.bf16 %v1677, %v1579
        %v2099 = vpack.c.bf16 %v1680, %v1582
        %v2100 = vpack.c.bf16 %v1682, %v1584
        %v2101 = vpack.c.bf16 %v1685, %v1587
        %v2102 = vpack.c.bf16 %v1687, %v1589
        %v2103 = vpack.c.bf16 %v1690, %v1592
        %v2104 = vpack.c.bf16 %v1692, %v1594
        %v2105 = vpack.c.bf16 %v1695, %v1597
        %v2106 = vpack.c.bf16 %v1697, %v1599
        %2107 = vst [vmem:[%s363] sm:$0xff] %v2091
        %2108 = vst [vmem:[%s363 + $0x8] sm:$0xff] %v2092
        %2109 = vst [vmem:[%s363 + $0x10] sm:$0xff] %v2093
        %2110 = vst [vmem:[%s363 + $0x18] sm:$0xff] %v2094
        %2111 = vst [vmem:[%s363 + $0x20] sm:$0xff] %v2095
        %2112 = vst [vmem:[%s363 + $0x28] sm:$0xff] %v2096
        %2113 = vst [vmem:[%s363 + $0x30] sm:$0xff] %v2097
        %2114 = vst [vmem:[%s363 + $0x38] sm:$0xff] %v2098
        %2115 = vst [vmem:[%s363 + $0x40] sm:$0xff] %v2099
        %2116 = vst [vmem:[%s363 + $0x48] sm:$0xff] %v2100
        %2117 = vst [vmem:[%s363 + $0x50] sm:$0xff] %v2101
        %2118 = vst [vmem:[%s363 + $0x58] sm:$0xff] %v2102
        %2119 = vst [vmem:[%s363 + $0x60] sm:$0xff] %v2103
        %2120 = vst [vmem:[%s363 + $0x68] sm:$0xff] %v2104
        %2121 = vst [vmem:[%s363 + $0x70] sm:$0xff] %v2105
        %2122 = vst [vmem:[%s363 + $0x78] sm:$0xff] %v2106
        %v2123 = vpack.c.bf16 %v1856, %v1758
        %v2124 = vpack.c.bf16 %v1858, %v1760
        %v2125 = vpack.c.bf16 %v1861, %v1763
        %v2126 = vpack.c.bf16 %v1863, %v1765
        %v2127 = vpack.c.bf16 %v1866, %v1768
        %v2128 = vpack.c.bf16 %v1868, %v1770
        %v2129 = vpack.c.bf16 %v1871, %v1773
        %v2130 = vpack.c.bf16 %v1873, %v1775
        %v2131 = vpack.c.bf16 %v1876, %v1778
        %v2132 = vpack.c.bf16 %v1878, %v1780
        %v2133 = vpack.c.bf16 %v1881, %v1783
        %v2134 = vpack.c.bf16 %v1883, %v1785
        %v2135 = vpack.c.bf16 %v1886, %v1788
        %v2136 = vpack.c.bf16 %v1888, %v1790
        %v2137 = vpack.c.bf16 %v1891, %v1793
        %v2138 = vpack.c.bf16 %v1893, %v1795
        %2139 = vst [vmem:[%s370] sm:$0xff] %v2123
        %2140 = vst [vmem:[%s370 + $0x8] sm:$0xff] %v2124
        %2141 = vst [vmem:[%s370 + $0x10] sm:$0xff] %v2125
        %2142 = vst [vmem:[%s370 + $0x18] sm:$0xff] %v2126
        %2143 = vst [vmem:[%s370 + $0x20] sm:$0xff] %v2127
        %2144 = vst [vmem:[%s370 + $0x28] sm:$0xff] %v2128
        %2145 = vst [vmem:[%s370 + $0x30] sm:$0xff] %v2129
        %2146 = vst [vmem:[%s370 + $0x38] sm:$0xff] %v2130
        %2147 = vst [vmem:[%s370 + $0x40] sm:$0xff] %v2131
        %2148 = vst [vmem:[%s370 + $0x48] sm:$0xff] %v2132
        %2149 = vst [vmem:[%s370 + $0x50] sm:$0xff] %v2133
        %2150 = vst [vmem:[%s370 + $0x58] sm:$0xff] %v2134
        %2151 = vst [vmem:[%s370 + $0x60] sm:$0xff] %v2135
        %2152 = vst [vmem:[%s370 + $0x68] sm:$0xff] %v2136
        %2153 = vst [vmem:[%s370 + $0x70] sm:$0xff] %v2137
        %2154 = vst [vmem:[%s370 + $0x78] sm:$0xff] %v2138
        %v2155 = vpack.c.bf16 %v2052, %v1954
        %v2156 = vpack.c.bf16 %v2054, %v1956
        %v2157 = vpack.c.bf16 %v2057, %v1959
        %v2158 = vpack.c.bf16 %v2059, %v1961
        %v2159 = vpack.c.bf16 %v2062, %v1964
        %v2160 = vpack.c.bf16 %v2064, %v1966
        %v2161 = vpack.c.bf16 %v2067, %v1969
        %v2162 = vpack.c.bf16 %v2069, %v1971
        %v2163 = vpack.c.bf16 %v2072, %v1974
        %v2164 = vpack.c.bf16 %v2074, %v1976
        %v2165 = vpack.c.bf16 %v2077, %v1979
        %v2166 = vpack.c.bf16 %v2079, %v1981
        %v2167 = vpack.c.bf16 %v2082, %v1984
        %v2168 = vpack.c.bf16 %v2084, %v1986
        %v2169 = vpack.c.bf16 %v2087, %v1989
        %v2170 = vpack.c.bf16 %v2089, %v1991
        %2171 = vst [vmem:[%s377] sm:$0xff] %v2155
        %2172 = vst [vmem:[%s377 + $0x8] sm:$0xff] %v2156
        %2173 = vst [vmem:[%s377 + $0x10] sm:$0xff] %v2157
        %2174 = vst [vmem:[%s377 + $0x18] sm:$0xff] %v2158
        %2175 = vst [vmem:[%s377 + $0x20] sm:$0xff] %v2159
        %2176 = vst [vmem:[%s377 + $0x28] sm:$0xff] %v2160
        %2177 = vst [vmem:[%s377 + $0x30] sm:$0xff] %v2161
        %2178 = vst [vmem:[%s377 + $0x38] sm:$0xff] %v2162
        %2179 = vst [vmem:[%s377 + $0x40] sm:$0xff] %v2163
        %2180 = vst [vmem:[%s377 + $0x48] sm:$0xff] %v2164
        %2181 = vst [vmem:[%s377 + $0x50] sm:$0xff] %v2165
        %2182 = vst [vmem:[%s377 + $0x58] sm:$0xff] %v2166
        %2183 = vst [vmem:[%s377 + $0x60] sm:$0xff] %v2167
        %2184 = vst [vmem:[%s377 + $0x68] sm:$0xff] %v2168
        %2185 = vst [vmem:[%s377 + $0x70] sm:$0xff] %v2169
        %2186 = vst [vmem:[%s377 + $0x78] sm:$0xff] %v2170
        %s2187 = sand.u32 %s148, 1
        %s2188 = scalar_lea.sflag [#allocation4], %s2187
        %s2189 = sand.u32 %s148, 1
        %s2190 = smul.addr %s2189, 128
        %s2191 = scalar_lea.vmem [#allocation11], %s2190
        %s2192 = sand.u32 %s30, 1
        %s2193 = scalar_lea.sflag [#allocation13], %s2192
        %s2194 = sand.u32 %s174, 1
        %s2195 = smul.addr %s2194, 128
        %s2196 = scalar_lea.vmem [#allocation12], %s2195
        %s2197 = sand.u32 %s30, 1
        %s2198 = scalar_lea.sflag [#allocation13], %s2197
        %s2199 = sand.u32 %s200, 1
        %s2200 = smul.addr %s2199, 128
        %s2201 = scalar_lea.vmem [#allocation14], %s2200
        // Predicated region
        $region61: #{tpu_custom_call.1} parent=39 // pred_check
          %p2202 = pneg %p158
        $region62: #{tpu_custom_call.1} parent=39 // pred_check_branch
          %2204 = sbr.rel (%p2202) target = $region64
        $region63: #{tpu_custom_call.1} parent=39 // pred_region
          %s2205 = smul.u32 16, %s30
          %2207 = vsyncadd %s2188, 0
          %s2208 = smul.addr %s2205, 2
          %s2209 = smul.addr %s2208, 4
          %s2210 = scalar_lea.hbm %s5, %s2209
          %s2211 = sshll.u32 %s2191, 4
          %s2212 = int_to_ptr.vmem [resolvable:$true] %s2211
          %s2213 = sshll.u32 %s2210, 4
          %s2214 = int_to_ptr.hbm [resolvable:$true] %s2213
          %2219 = dma.vmem_to_hbm [thread:$0]  %s2212, 2048, %s2214, %s2188, 128, 128, 8
        $region64: #{tpu_custom_call.1} parent=39 // pred_fallthru
          _
        // Predicated region
        $region65: #{tpu_custom_call.1} parent=39 // pred_check
          %p2220 = pneg %p184
        $region66: #{tpu_custom_call.1} parent=39 // pred_check_branch
          %2222 = sbr.rel (%p2220) target = $region68
        $region67: #{tpu_custom_call.1} parent=39 // pred_region
          %s2223 = smul.u32 16, %s30
          %2225 = vsyncadd %s2193, 0
          %s2226 = smul.addr %s2223, 2
          %s2227 = smul.addr %s2226, 4
          %s2228 = scalar_lea.hbm %s6, %s2227
          %s2229 = sshll.u32 %s2196, 4
          %s2230 = int_to_ptr.vmem [resolvable:$true] %s2229
          %s2231 = sshll.u32 %s2228, 4
          %s2232 = int_to_ptr.hbm [resolvable:$true] %s2231
          %2237 = dma.vmem_to_hbm [thread:$0]  %s2230, 2048, %s2232, %s2193, 128, 128, 8
        $region68: #{tpu_custom_call.1} parent=39 // pred_fallthru
          _
        // Predicated region
        $region69: #{tpu_custom_call.1} parent=39 // pred_check
          %p2238 = pneg %p210
        $region70: #{tpu_custom_call.1} parent=39 // pred_check_branch
          %2240 = sbr.rel (%p2238) target = $region72
        $region71: #{tpu_custom_call.1} parent=39 // pred_region
          %s2241 = smul.u32 16, %s30
          %2243 = vsyncadd %s2198, 0
          %s2244 = smul.addr %s2241, 2
          %s2245 = smul.addr %s2244, 4
          %s2246 = scalar_lea.hbm %s7, %s2245
          %s2247 = sshll.u32 %s2201, 4
          %s2248 = int_to_ptr.vmem [resolvable:$true] %s2247
          %s2249 = sshll.u32 %s2246, 4
          %s2250 = int_to_ptr.hbm [resolvable:$true] %s2249
          %2255 = dma.vmem_to_hbm [thread:$0]  %s2248, 2048, %s2250, %s2198, 128, 128, 8
        $region72: #{tpu_custom_call.1} parent=39 // pred_fallthru
          _
      $region40: #{tpu_custom_call.1} parent=5 // pred_fallthru
        _
      %p2256 = scmp.le.s32.totalorder 2, %s25
      // Predicated region
      $region73: #{tpu_custom_call.1} parent=5 // pred_check
        %p2257 = pneg %p2256
      $region74: #{tpu_custom_call.1} parent=5 // pred_check_branch
        %2259 = sbr.rel (%p2257) target = $region76
      $region75: #{tpu_custom_call.1} parent=5 // pred_region
        %s2260 = ssub.s32 %s25, 2
        // Predicated region
        $region77: #{tpu_custom_call.1} parent=75 // pred_check
          %p2261 = pneg %p164
        $region78: #{tpu_custom_call.1} parent=75 // pred_check_branch
          %2263 = sbr.rel (%p2261) target = $region80
        $region79: #{tpu_custom_call.1} parent=75 // pred_region
          %s2264 = sand.u32 %s149, 1
          %s2265 = scalar_lea.sflag [#allocation4], %s2264
          %s2266 = sand.u32 %s149, 1
          %s2267 = smul.addr %s2266, 128
          %s2268 = scalar_lea.vmem [#allocation11], %s2267
          %2270 = dma.done %s2265, 2048
        $region80: #{tpu_custom_call.1} parent=75 // pred_fallthru
          _
        // Predicated region
        $region81: #{tpu_custom_call.1} parent=75 // pred_check
          %p2271 = pneg %p190
        $region82: #{tpu_custom_call.1} parent=75 // pred_check_branch
          %2273 = sbr.rel (%p2271) target = $region84
        $region83: #{tpu_custom_call.1} parent=75 // pred_region
          %s2274 = sand.u32 %s31, 1
          %s2275 = scalar_lea.sflag [#allocation13], %s2274
          %s2276 = sand.u32 %s175, 1
          %s2277 = smul.addr %s2276, 128
          %s2278 = scalar_lea.vmem [#allocation12], %s2277
          %2280 = dma.done %s2275, 2048
        $region84: #{tpu_custom_call.1} parent=75 // pred_fallthru
          _
        // Predicated region
        $region85: #{tpu_custom_call.1} parent=75 // pred_check
          %p2281 = pneg %p216
        $region86: #{tpu_custom_call.1} parent=75 // pred_check_branch
          %2283 = sbr.rel (%p2281) target = $region88
        $region87: #{tpu_custom_call.1} parent=75 // pred_region
          %s2284 = sand.u32 %s31, 1
          %s2285 = scalar_lea.sflag [#allocation13], %s2284
          %s2286 = sand.u32 %s201, 1
          %s2287 = smul.addr %s2286, 128
          %s2288 = scalar_lea.vmem [#allocation14], %s2287
          %2290 = dma.done %s2285, 2048
        $region88: #{tpu_custom_call.1} parent=75 // pred_fallthru
          _
      $region76: #{tpu_custom_call.1} parent=5 // pred_fallthru
        _
    $region6: #{tpu_custom_call.1} parent=1 // loop_footer
      %s29 = sadd.s32 1, %s25
    $region7: #{tpu_custom_call.1} parent=1 // loop_footer_branch
      %24 = sbr.rel target = $region3
    $region8: #{tpu_custom_call.1} parent=1 // loop_exit
      _
    %2291 = vsyncpa [#allocation3], 1
    %s2292 = scalar_lea.sflag [#allocation3], 1
    %2293 = vsyncpa %s2292, 1
    %2294 = vsyncpa [#allocation6], 1
    %2295 = vsyncpa [#allocation9], 1
    %2296 = vsyncpa [#allocation4], 1
    %s2297 = scalar_lea.sflag [#allocation4], 1
    %2298 = vsyncpa %s2297, 1
    %2299 = vsyncpa [#allocation13], 1
    %s2300 = scalar_lea.sflag [#allocation13], 1
    %2301 = vsyncpa %s2300, 1

</llo_original>
